<compile_context>
chip_gen: v5e
topology: v5e:2x2
jax: 0.10.0
libtpu: 0.0.40
codegen_flags: <defaults>
</compile_context>

<pallas_src>
import functools

import jax
import jax.numpy as jnp
from jax import lax
from jax.experimental import pallas as pl
from jax.experimental.pallas import tpu as pltpu

_SUBLANE = 8
_LANE = 128


def _round_up(x, m):
    return ((x + m - 1) // m) * m


def _elementwise_dtype():
    """bf16 tanh chain only on bf16-native VPU/EUP generations (v6e / v7x)."""
    try:
        kind = jax.devices()[0].device_kind.lower()
    except Exception:
        return jnp.float32
    if ("v6" in kind) or ("v7" in kind) or ("7x" in kind):
        return jnp.bfloat16
    return jnp.float32


def _vmem_capacity_bytes():
    try:
        info = pltpu.get_tpu_info()
        cap = getattr(info, "vmem_capacity_bytes", None)
        if cap:
            return int(cap)
    except Exception:
        pass
    return 64 * 1024 * 1024  # conservative (v7x-sized) fallback


def _choose_tiles(B, S, E, vmem_budget):
    """Pick (B_pad, TB, S_pad, Sc) so the per-grid-step footprint fits VMEM.

    Per-step bytes (heuristic):
      enc block, 2x buffered bf16 : 4  * TB*Sc*E
      live f32 intermediates      : ~10 * TB*Sc*E   (proj + pre + energy)
      e_x out block, 2x f32       : 8  * TB*Sc
      bias block, 2x f32          : 8  * TB*E
      weights (allow 2x bf16)     : ~4 * E*E
    """
    w_bytes = 2 * (E * E * 2) + 8 * E * 4

    def step_bytes(tb, sc):
        return tb * sc * E * 14 + tb * sc * 8 + tb * E * 8 + w_bytes

    b8 = _round_up(B, _SUBLANE)
    s8 = _round_up(S, _SUBLANE)

    # Batch tile: multiple of 8, >= 2 grid steps when possible (megacore on
    # v7x), small enough that a minimal sequence chunk fits the budget.
    tb = _SUBLANE
    for cand in (256, 128, 64, 32, 16, 8):
        if cand > b8:
            continue
        if b8 > _SUBLANE and _round_up(B, cand) // cand < 2:
            continue
        if cand > _SUBLANE and step_bytes(cand, min(s8, _LANE)) > vmem_budget:
            continue
        tb = cand
        break
    b_pad = _round_up(B, tb)

    # Sequence chunk: the whole (8-padded) sequence if it fits, otherwise the
    # largest multiple of 128 that fits (lane-dense e_x stores, legal block
    # shapes); this bounds the live [TB, Sc, E] f32 intermediates.
    if step_bytes(tb, s8) <= vmem_budget:
        sc = s8
    else:
        sc = _LANE
        while sc + _LANE < s8 and step_bytes(tb, sc + _LANE) <= vmem_budget:
            sc += _LANE
    s_pad = _round_up(S, sc)
    return b_pad, tb, s_pad, sc


def _attention_kernel(enc_ref, bias_ref, w_ref, wv_ref, bv_ref, ex_ref, den_ref,
                      *, s_valid, elemwise_dtype):
    # enc_ref: [TB, Sc, E] bf16        bias_ref: [TB, E] f32 (hidden proj + b_attn)
    # w_ref:   [E, E]  bf16            wv_ref:   [1, E]  f32
    # bv_ref:  [1] f32 in SMEM
    # ex_ref:  [TB, Sc] f32 (unnormalized exp)   den_ref: [TB, 1] f32 accumulator
    s = pl.program_id(1)

    @pl.when(s == 0)
    def _init():
        den_ref[...] = jnp.zeros_like(den_ref)

    tb, sc, e = enc_ref.shape

    # Encoder projection: one flat 2-D MXU matmul over the merged (TB*Sc) rows.
    # Sc is a multiple of 8, so the merge is layout-preserving (no relayout).
    enc2d = enc_ref[...].reshape(tb * sc, e)
    proj = jnp.dot(enc2d, w_ref[...], preferred_element_type=jnp.float32)
    proj = proj.reshape(tb, sc, e)

    # Hidden projection + b_attn were hoisted to the wrapper (bias_ref).
    energy = jnp.tanh((proj + bias_ref[...][:, None, :]).astype(elemwise_dtype))

    # Width-1 "v" projection: VPU multiply + XLU lane reduce (f32 accumulate).
    att = jnp.sum(energy * wv_ref[...], axis=-1) + bv_ref[0]        # [TB, Sc]

    # Temperature softmax numerator. No max-subtraction, matching the torch
    # reference exactly (logits here are far from the f32 exp overflow range).
    # Padded sequence positions are masked out of both the store and the sum.
    pos = s * sc + lax.broadcasted_iota(jnp.int32, (1, sc), 1)
    e_x = jnp.where(pos < s_valid, jnp.exp(att * 0.1), 0.0)

    ex_ref[...] = e_x
    den_ref[...] += jnp.sum(e_x, axis=-1, keepdims=True)


def _pallas_attention(enc, bias, w_enc, wv, bv, *, tb, sc, s_valid,
                      elemwise_dtype, vmem_limit_bytes, single_buffer_weights):
    b_pad, s_pad, e = enc.shape
    grid = (b_pad // tb, s_pad // sc)

    # Constant-index weight specs: request single buffering (they are never
    # re-fetched); fall back to the default if the hint is unsupported.
    wkw = {}
    if single_buffer_weights:
        wkw = dict(pipeline_mode=pl.Buffered(1))

    kernel = functools.partial(_attention_kernel, s_valid=s_valid,
                               elemwise_dtype=elemwise_dtype)
    return pl.pallas_call(
        kernel,
        out_shape=(
            jax.ShapeDtypeStruct((b_pad, s_pad), jnp.float32),   # unnormalized e_x
            jax.ShapeDtypeStruct((b_pad, 1), jnp.float32),       # softmax denominator
        ),
        grid=grid,
        in_specs=[
            pl.BlockSpec((tb, sc, e), lambda b, s: (b, s, 0)),           # encoder (bf16)
            pl.BlockSpec((tb, e), lambda b, s: (b, 0)),                  # hidden bias (f32)
            pl.BlockSpec((e, e), lambda b, s: (0, 0), **wkw),            # w_enc (bf16)
            pl.BlockSpec((1, e), lambda b, s: (0, 0), **wkw),            # w_v row (f32)
            pl.BlockSpec(memory_space=pltpu.MemorySpace.SMEM),           # b_v scalar
        ],
        out_specs=(
            pl.BlockSpec((tb, sc), lambda b, s: (b, s)),
            pl.BlockSpec((tb, 1), lambda b, s: (b, 0)),                  # resident across s
        ),
        compiler_params=pltpu.CompilerParams(
            dimension_semantics=("parallel", "arbitrary"),
            vmem_limit_bytes=int(vmem_limit_bytes),
        ),
    )(enc, bias, w_enc, wv, bv)


def attention_forward_bse(hidden, encoder_outputs_bse, w_attn, b_attn, w_v, b_v,
                          *, vmem_budget=None):
    """Production entry point.

    hidden: [B, E], encoder_outputs_bse: [B, S, E] (batch-major layout),
    w_attn: [E, 2E] (torch out x in), b_attn: [E], w_v: [1, E], b_v: [1].
    Returns attention weights [B, S] (softmax over the sequence axis, T=10).
    """
    B, S, E = encoder_outputs_bse.shape
    assert hidden.shape == (B, E), (
        "Attention requires enc_hid_dim == dec_hid_dim (hidden must be [B, E])")

    vmem_cap = _vmem_capacity_bytes()
    if vmem_budget is None:
        vmem_budget = int(vmem_cap * 0.55)        # headroom for compiler scratch
    vmem_limit = max(32 * 1024 * 1024, int(vmem_cap * 0.75))

    b_pad, tb, s_pad, sc = _choose_tiles(B, S, E, vmem_budget)

    f32 = jnp.float32
    w_attn_f = jnp.asarray(w_attn, f32)
    w_enc = w_attn_f[:, :E].T.astype(jnp.bfloat16)                 # [E, E]
    w_hid = w_attn_f[:, E:].T                                      # [E, E]
    # Hidden projection + b_attn hoisted: one tiny XLA matmul, streamed as bias.
    bias = hidden.astype(f32) @ w_hid + jnp.asarray(b_attn, f32)   # [B, E]
    wv_row = jnp.asarray(w_v, f32).reshape(1, E)
    bv = jnp.asarray(b_v, f32).reshape(1)

    enc = encoder_outputs_bse.astype(jnp.bfloat16)
    if b_pad != B or s_pad != S:
        enc = jnp.pad(enc, ((0, b_pad - B), (0, s_pad - S), (0, 0)))
    if b_pad != B:
        bias = jnp.pad(bias, ((0, b_pad - B), (0, 0)))

    elemwise_dtype = _elementwise_dtype()
    kwargs = dict(tb=tb, sc=sc, s_valid=S, elemwise_dtype=elemwise_dtype,
                  vmem_limit_bytes=vmem_limit)
    try:
        ex, den = _pallas_attention(enc, bias, w_enc, wv_row, bv,
                                    single_buffer_weights=True, **kwargs)
    except Exception:
        # pl.Buffered(1) hint not supported on this jax/Mosaic build.
        ex, den = _pallas_attention(enc, bias, w_enc, wv_row, bv,
                                    single_buffer_weights=False, **kwargs)

    # Final normalization: tiny XLA divide over [B, S] (the kernel emits the
    # unnormalized numerators plus the per-row denominator accumulator).
    return ex[:B, :S] / den[:B]


def attention_forward(hidden, encoder_outputs, w_attn, b_attn, w_v, b_v,
                      *, vmem_budget=None):
    """Torch-layout compatibility wrapper.

    hidden: [B, E], encoder_outputs: [S, B, E]. Returns [S, B].
    The [S,B,E]->[B,S,E] / [B,S]->[S,B] transposes are layout plumbing for the
    torch convention; in production feed [B, S, E] to attention_forward_bse.
    """
    S, B, E = encoder_outputs.shape
    enc_bse = jnp.transpose(encoder_outputs, (1, 0, 2))
    out_bs = attention_forward_bse(hidden, enc_bse, w_attn, b_attn, w_v, b_v,
                                   vmem_budget=vmem_budget)
    return out_bs.T


def attention_reference(hidden, encoder_outputs, w_attn, b_attn, w_v, b_v):
    """Pure-JAX reference mirroring the torch forward."""
    S, B, E = encoder_outputs.shape
    new_hidden = jnp.broadcast_to(hidden[None, :, :], (S, B, E))
    new_outputs = jnp.concatenate([encoder_outputs, new_hidden], axis=2)
    energy = jnp.tanh(new_outputs @ w_attn.T + b_attn)
    attention = (energy @ w_v.T + b_v)[:, :, 0]
    e_x = jnp.exp(attention / 10.0)
    return e_x / jnp.sum(e_x, axis=0)


def _make_case(key, S, B, E):
    k_enc, k_hid, k_w1, k_b1, k_wv, k_bv = jax.random.split(key, 6)
    enc = jax.random.normal(k_enc, (S, B, E), dtype=jnp.float32)
    hid = jax.random.normal(k_hid, (B, E), dtype=jnp.float32)
    bound1 = 1.0 / jnp.sqrt(2.0 * E)
    w_attn = jax.random.uniform(k_w1, (E, 2 * E), jnp.float32, -bound1, bound1)
    b_attn = jax.random.uniform(k_b1, (E,), jnp.float32, -bound1, bound1)
    bound2 = 1.0 / jnp.sqrt(float(E))
    w_v = jax.random.uniform(k_wv, (1, E), jnp.float32, -bound2, bound2)
    b_v = jax.random.uniform(k_bv, (1,), jnp.float32, -bound2, bound2)
    return hid, enc, w_attn, b_attn, w_v, b_v


if __name__ == "__main__":
    key = jax.random.PRNGKey(0)
    k1, k2 = jax.random.split(key)

    # Case 1: small aligned shapes; single sequence chunk, 2 batch blocks
    # (exercises the megacore-friendly batch grid).
    S1, B1, E1 = 8, 16, 32
    args1 = _make_case(k1, S1, B1, E1)
    out1 = jax.block_until_ready(attention_forward(*args1))
    ref1 = attention_reference(*args1)
    assert out1.shape == (S1, B1)
    assert jnp.allclose(out1, ref1, rtol=1e-2, atol=1e-4), (
        "case1 mismatch vs reference, max abs err = "
        f"{float(jnp.max(jnp.abs(out1 - ref1)))}")

    # Case 2: unaligned B / S with a deliberately tiny VMEM budget to force
    # batch padding, sequence padding + masking, and multi-chunk denominator
    # accumulation across the inner grid axis.
    S2, B2, E2 = 200, 20, 32
    args2 = _make_case(k2, S2, B2, E2)
    out2 = jax.block_until_ready(
        attention_forward(*args2, vmem_budget=1_000_000))
    ref2 = attention_reference(*args2)
    assert out2.shape == (S2, B2)
    assert jnp.allclose(out2, ref2, rtol=1e-2, atol=1e-4), (
        "case2 mismatch vs reference, max abs err = "
        f"{float(jnp.max(jnp.abs(out2 - ref2)))}")

    print("KERNEL_OK")
</pallas_src>

<mosaic_0001>
module attributes {stable_mosaic.version = 11 : i64} {
  func.func @_attention_kernel(%arg0: i32, %arg1: i32, %arg2: memref<8x8x32xbf16, #tpu.memory_space<vmem>>, %arg3: memref<8x32xf32, #tpu.memory_space<vmem>>, %arg4: memref<32x32xbf16, #tpu.memory_space<vmem>>, %arg5: memref<1x32xf32, #tpu.memory_space<vmem>>, %arg6: memref<1xf32, #tpu.memory_space<smem>>, %arg7: memref<8x8xf32, #tpu.memory_space<vmem>>, %arg8: memref<8x1xf32, #tpu.memory_space<vmem>>) attributes {dimension_semantics = [#tpu.dimension_semantics<parallel>, #tpu.dimension_semantics<arbitrary>], iteration_bounds = array<i64: 2, 1>, scalar_prefetch = 0 : i64, scratch_operands = 0 : i64, tpu.core_type = #tpu.core_type<tc>, window_params = [{transform_indices = @transform_0, window_bounds = array<i64: 8, 8, 32>}, {transform_indices = @transform_1, window_bounds = array<i64: 8, 32>}, {pipeline_mode = #tpu.pipeline_mode<synchronous>, transform_indices = @transform_2, window_bounds = array<i64: 32, 32>}, {pipeline_mode = #tpu.pipeline_mode<synchronous>, transform_indices = @transform_3, window_bounds = array<i64: 1, 32>}, {transform_indices = @transform_4, window_bounds = array<i64: 1>}, {transform_indices = @transform_5, window_bounds = array<i64: 8, 8>}, {transform_indices = @transform_6, window_bounds = array<i64: 8, 1>}]} {
    %c0_i32 = arith.constant 0 : i32
    %0 = arith.cmpi eq, %arg1, %c0_i32 : i32
    %1 = arith.extui %0 : i1 to i32
    %c0_i32_0 = arith.constant 0 : i32
    %2 = arith.cmpi ne, %1, %c0_i32_0 : i32
    scf.if %2 {
      %cst_21 = arith.constant 0.000000e+00 : f32
      %40 = vector.broadcast %cst_21 : f32 to vector<8x1xf32>
      %c0_22 = arith.constant 0 : index
      %c0_23 = arith.constant 0 : index
      %41 = vector.load %arg8[%c0_22, %c0_23] : memref<8x1xf32, #tpu.memory_space<vmem>>, vector<8x1xf32>
      tpu.vector_store %arg8[%c0_22, %c0_23], %40 {strides = array<i32>} : memref<8x1xf32, #tpu.memory_space<vmem>>, vector<8x1xf32>,
    } else {
    }
    %c0 = arith.constant 0 : index
    %c0_1 = arith.constant 0 : index
    %c0_2 = arith.constant 0 : index
    %3 = vector.load %arg2[%c0, %c0_1, %c0_2] : memref<8x8x32xbf16, #tpu.memory_space<vmem>>, vector<8x8x32xbf16>
    %4 = vector.shape_cast %3 : vector<8x8x32xbf16> to vector<64x32xbf16>
    %c0_3 = arith.constant 0 : index
    %c0_4 = arith.constant 0 : index
    %5 = vector.load %arg4[%c0_3, %c0_4] : memref<32x32xbf16, #tpu.memory_space<vmem>>, vector<32x32xbf16>
    %cst = arith.constant dense<0.000000e+00> : vector<64x32xf32>
    %6 = tpu.matmul %4, %5, %cst {dimension_numbers = #tpu.dot_dimension_numbers<[1], [0], [0], [1], [0, 0, 1, 1], [], []>} : vector<64x32xbf16>, vector<32x32xbf16>, vector<64x32xf32> -> vector<64x32xf32>
    %7 = vector.shape_cast %6 : vector<64x32xf32> to vector<8x8x32xf32>
    %c0_5 = arith.constant 0 : index
    %c0_6 = arith.constant 0 : index
    %8 = vector.load %arg3[%c0_5, %c0_6] : memref<8x32xf32, #tpu.memory_space<vmem>>, vector<8x32xf32>
    %9 = vector.shape_cast %8 : vector<8x32xf32> to vector<8x1x32xf32>
    %10 = vector.broadcast %9 : vector<8x1x32xf32> to vector<8x8x32xf32>
    %11 = arith.addf %7, %10 : vector<8x8x32xf32>
    %12 = math.tanh %11 : vector<8x8x32xf32>
    %c0_7 = arith.constant 0 : index
    %c0_8 = arith.constant 0 : index
    %13 = vector.load %arg5[%c0_7, %c0_8] : memref<1x32xf32, #tpu.memory_space<vmem>>, vector<1x32xf32>
    %14 = vector.shape_cast %13 : vector<1x32xf32> to vector<1x1x32xf32>
    %15 = vector.broadcast %14 : vector<1x1x32xf32> to vector<8x8x32xf32>
    %16 = arith.mulf %12, %15 : vector<8x8x32xf32>
    %cst_9 = arith.constant dense<0.000000e+00> : vector<8x8xf32>
    %17 = vector.multi_reduction <add>, %16, %cst_9 [2] : vector<8x8x32xf32> to vector<8x8xf32>
    %c0_10 = arith.constant 0 : index
    %18 = memref.load %arg6[%c0_10] : memref<1xf32, #tpu.memory_space<smem>>
    %19 = vector.broadcast %18 : f32 to vector<8x8xf32>
    %20 = arith.addf %17, %19 : vector<8x8xf32>
    %c8_i32 = arith.constant 8 : i32
    %21 = arith.muli %arg1, %c8_i32 : i32
    %22 = tpu.iota {dimensions = array<i32: 1>} : vector<1x8xi32>
    %23 = vector.broadcast %21 : i32 to vector<1x8xi32>
    %24 = arith.addi %23, %22 : vector<1x8xi32>
    %c8_i32_11 = arith.constant 8 : i32
    %25 = vector.broadcast %c8_i32_11 : i32 to vector<1x8xi32>
    %26 = arith.cmpi slt, %24, %25 : vector<1x8xi32>
    %cst_12 = arith.constant 1.000000e-01 : f32
    %27 = vector.broadcast %cst_12 : f32 to vector<8x8xf32>
    %28 = arith.mulf %20, %27 : vector<8x8xf32>
    %29 = math.exp %28 : vector<8x8xf32>
    %cst_13 = arith.constant 0.000000e+00 : f32
    %30 = vector.shape_cast %26 : vector<1x8xi1> to vector<1x8xi1>
    %31 = vector.broadcast %30 : vector<1x8xi1> to vector<8x8xi1>
    %32 = vector.broadcast %cst_13 : f32 to vector<8x8xf32>
    %33 = arith.select %31, %29, %32 : vector<8x8xi1>, vector<8x8xf32>
    %c0_14 = arith.constant 0 : index
    %c0_15 = arith.constant 0 : index
    %34 = vector.load %arg7[%c0_14, %c0_15] : memref<8x8xf32, #tpu.memory_space<vmem>>, vector<8x8xf32>
    tpu.vector_store %arg7[%c0_14, %c0_15], %33 {strides = array<i32>} : memref<8x8xf32, #tpu.memory_space<vmem>>, vector<8x8xf32>,
    %c0_16 = arith.constant 0 : index
    %c0_17 = arith.constant 0 : index
    %35 = vector.load %arg8[%c0_16, %c0_17] : memref<8x1xf32, #tpu.memory_space<vmem>>, vector<8x1xf32>
    %cst_18 = arith.constant dense<0.000000e+00> : vector<8xf32>
    %36 = vector.multi_reduction <add>, %33, %cst_18 [1] : vector<8x8xf32> to vector<8xf32>
    %37 = vector.shape_cast %36 : vector<8xf32> to vector<8x1xf32>
    %38 = arith.addf %35, %37 : vector<8x1xf32>
    %c0_19 = arith.constant 0 : index
    %c0_20 = arith.constant 0 : index
    %39 = vector.load %arg8[%c0_19, %c0_20] : memref<8x1xf32, #tpu.memory_space<vmem>>, vector<8x1xf32>
    tpu.vector_store %arg8[%c0_19, %c0_20], %38 {strides = array<i32>} : memref<8x1xf32, #tpu.memory_space<vmem>>, vector<8x1xf32>,
    return
  }
  func.func @transform_0(%arg0: i32, %arg1: i32) -> (i32, i32, i32) {
    %c0_i32 = arith.constant 0 : i32
    %c0_i32_0 = arith.constant 0 : i32
    return %arg0, %arg1, %c0_i32 : i32, i32, i32
  }
  func.func @transform_1(%arg0: i32, %arg1: i32) -> (i32, i32) {
    %c0_i32 = arith.constant 0 : i32
    %c0_i32_0 = arith.constant 0 : i32
    return %arg0, %c0_i32 : i32, i32
  }
  func.func @transform_2(%arg0: i32, %arg1: i32) -> (i32, i32) {
    %c0_i32 = arith.constant 0 : i32
    %c0_i32_0 = arith.constant 0 : i32
    %c0_i32_1 = arith.constant 0 : i32
    return %c0_i32, %c0_i32_0 : i32, i32
  }
  func.func @transform_3(%arg0: i32, %arg1: i32) -> (i32, i32) {
    %c0_i32 = arith.constant 0 : i32
    %c0_i32_0 = arith.constant 0 : i32
    %c0_i32_1 = arith.constant 0 : i32
    return %c0_i32, %c0_i32_0 : i32, i32
  }
  func.func @transform_4(%arg0: i32, %arg1: i32) -> i32 {
    %c0_i32 = arith.constant 0 : i32
    %c0_i32_0 = arith.constant 0 : i32
    return %c0_i32 : i32
  }
  func.func @transform_5(%arg0: i32, %arg1: i32) -> (i32, i32) {
    %c0_i32 = arith.constant 0 : i32
    return %arg0, %arg1 : i32, i32
  }
  func.func @transform_6(%arg0: i32, %arg1: i32) -> (i32, i32) {
    %c0_i32 = arith.constant 0 : i32
    %c0_i32_0 = arith.constant 0 : i32
    return %arg0, %c0_i32 : i32, i32
  }
}

module attributes {stable_mosaic.version = 11 : i64} {
  func.func @_attention_kernel(%arg0: i32, %arg1: i32, %arg2: memref<8x8x32xbf16, #tpu.memory_space<vmem>>, %arg3: memref<8x32xf32, #tpu.memory_space<vmem>>, %arg4: memref<32x32xbf16, #tpu.memory_space<vmem>>, %arg5: memref<1x32xf32, #tpu.memory_space<vmem>>, %arg6: memref<1xf32, #tpu.memory_space<smem>>, %arg7: memref<8x8xf32, #tpu.memory_space<vmem>>, %arg8: memref<8x1xf32, #tpu.memory_space<vmem>>) attributes {dimension_semantics = [#tpu.dimension_semantics<parallel>, #tpu.dimension_semantics<arbitrary>], iteration_bounds = array<i64: 2, 1>, scalar_prefetch = 0 : i64, scratch_operands = 0 : i64, tpu.core_type = #tpu.core_type<tc>, window_params = [{transform_indices = @transform_0, window_bounds = array<i64: 8, 8, 32>}, {transform_indices = @transform_1, window_bounds = array<i64: 8, 32>}, {pipeline_mode = #tpu.pipeline_mode<synchronous>, transform_indices = @transform_2, window_bounds = array<i64: 32, 32>}, {pipeline_mode = #tpu.pipeline_mode<synchronous>, transform_indices = @transform_3, window_bounds = array<i64: 1, 32>}, {transform_indices = @transform_4, window_bounds = array<i64: 1>}, {transform_indices = @transform_5, window_bounds = array<i64: 8, 8>}, {transform_indices = @transform_6, window_bounds = array<i64: 8, 1>}]} {
    %c0_i32 = arith.constant 0 : i32
    %0 = arith.cmpi eq, %arg1, %c0_i32 : i32
    %1 = arith.extui %0 : i1 to i32
    %c0_i32_0 = arith.constant 0 : i32
    %2 = arith.cmpi ne, %1, %c0_i32_0 : i32
    scf.if %2 {
      %cst_21 = arith.constant 0.000000e+00 : f32
      %40 = vector.broadcast %cst_21 : f32 to vector<8x1xf32>
      %c0_22 = arith.constant 0 : index
      %c0_23 = arith.constant 0 : index
      %41 = vector.load %arg8[%c0_22, %c0_23] : memref<8x1xf32, #tpu.memory_space<vmem>>, vector<8x1xf32>
      tpu.vector_store %arg8[%c0_22, %c0_23], %40 {strides = array<i32>} : memref<8x1xf32, #tpu.memory_space<vmem>>, vector<8x1xf32>,
    } else {
    }
    %c0 = arith.constant 0 : index
    %c0_1 = arith.constant 0 : index
    %c0_2 = arith.constant 0 : index
    %3 = vector.load %arg2[%c0, %c0_1, %c0_2] : memref<8x8x32xbf16, #tpu.memory_space<vmem>>, vector<8x8x32xbf16>
    %4 = vector.shape_cast %3 : vector<8x8x32xbf16> to vector<64x32xbf16>
    %c0_3 = arith.constant 0 : index
    %c0_4 = arith.constant 0 : index
    %5 = vector.load %arg4[%c0_3, %c0_4] : memref<32x32xbf16, #tpu.memory_space<vmem>>, vector<32x32xbf16>
    %cst = arith.constant dense<0.000000e+00> : vector<64x32xf32>
    %6 = tpu.matmul %4, %5, %cst {dimension_numbers = #tpu.dot_dimension_numbers<[1], [0], [0], [1], [0, 0, 1, 1], [], []>} : vector<64x32xbf16>, vector<32x32xbf16>, vector<64x32xf32> -> vector<64x32xf32>
    %7 = vector.shape_cast %6 : vector<64x32xf32> to vector<8x8x32xf32>
    %c0_5 = arith.constant 0 : index
    %c0_6 = arith.constant 0 : index
    %8 = vector.load %arg3[%c0_5, %c0_6] : memref<8x32xf32, #tpu.memory_space<vmem>>, vector<8x32xf32>
    %9 = vector.shape_cast %8 : vector<8x32xf32> to vector<8x1x32xf32>
    %10 = vector.broadcast %9 : vector<8x1x32xf32> to vector<8x8x32xf32>
    %11 = arith.addf %7, %10 : vector<8x8x32xf32>
    %12 = math.tanh %11 : vector<8x8x32xf32>
    %c0_7 = arith.constant 0 : index
    %c0_8 = arith.constant 0 : index
    %13 = vector.load %arg5[%c0_7, %c0_8] : memref<1x32xf32, #tpu.memory_space<vmem>>, vector<1x32xf32>
    %14 = vector.shape_cast %13 : vector<1x32xf32> to vector<1x1x32xf32>
    %15 = vector.broadcast %14 : vector<1x1x32xf32> to vector<8x8x32xf32>
    %16 = arith.mulf %12, %15 : vector<8x8x32xf32>
    %cst_9 = arith.constant dense<0.000000e+00> : vector<8x8xf32>
    %17 = vector.multi_reduction <add>, %16, %cst_9 [2] : vector<8x8x32xf32> to vector<8x8xf32>
    %c0_10 = arith.constant 0 : index
    %18 = memref.load %arg6[%c0_10] : memref<1xf32, #tpu.memory_space<smem>>
    %19 = vector.broadcast %18 : f32 to vector<8x8xf32>
    %20 = arith.addf %17, %19 : vector<8x8xf32>
    %c8_i32 = arith.constant 8 : i32
    %21 = arith.muli %arg1, %c8_i32 : i32
    %22 = tpu.iota {dimensions = array<i32: 1>} : vector<1x8xi32>
    %23 = vector.broadcast %21 : i32 to vector<1x8xi32>
    %24 = arith.addi %23, %22 : vector<1x8xi32>
    %c8_i32_11 = arith.constant 8 : i32
    %25 = vector.broadcast %c8_i32_11 : i32 to vector<1x8xi32>
    %26 = arith.cmpi slt, %24, %25 : vector<1x8xi32>
    %cst_12 = arith.constant 1.000000e-01 : f32
    %27 = vector.broadcast %cst_12 : f32 to vector<8x8xf32>
    %28 = arith.mulf %20, %27 : vector<8x8xf32>
    %29 = math.exp %28 : vector<8x8xf32>
    %cst_13 = arith.constant 0.000000e+00 : f32
    %30 = vector.shape_cast %26 : vector<1x8xi1> to vector<1x8xi1>
    %31 = vector.broadcast %30 : vector<1x8xi1> to vector<8x8xi1>
    %32 = vector.broadcast %cst_13 : f32 to vector<8x8xf32>
    %33 = arith.select %31, %29, %32 : vector<8x8xi1>, vector<8x8xf32>
    %c0_14 = arith.constant 0 : index
    %c0_15 = arith.constant 0 : index
    %34 = vector.load %arg7[%c0_14, %c0_15] : memref<8x8xf32, #tpu.memory_space<vmem>>, vector<8x8xf32>
    tpu.vector_store %arg7[%c0_14, %c0_15], %33 {strides = array<i32>} : memref<8x8xf32, #tpu.memory_space<vmem>>, vector<8x8xf32>,
    %c0_16 = arith.constant 0 : index
    %c0_17 = arith.constant 0 : index
    %35 = vector.load %arg8[%c0_16, %c0_17] : memref<8x1xf32, #tpu.memory_space<vmem>>, vector<8x1xf32>
    %cst_18 = arith.constant dense<0.000000e+00> : vector<8xf32>
    %36 = vector.multi_reduction <add>, %33, %cst_18 [1] : vector<8x8xf32> to vector<8xf32>
    %37 = vector.shape_cast %36 : vector<8xf32> to vector<8x1xf32>
    %38 = arith.addf %35, %37 : vector<8x1xf32>
    %c0_19 = arith.constant 0 : index
    %c0_20 = arith.constant 0 : index
    %39 = vector.load %arg8[%c0_19, %c0_20] : memref<8x1xf32, #tpu.memory_space<vmem>>, vector<8x1xf32>
    tpu.vector_store %arg8[%c0_19, %c0_20], %38 {strides = array<i32>} : memref<8x1xf32, #tpu.memory_space<vmem>>, vector<8x1xf32>,
    return
  }
  func.func @transform_0(%arg0: i32, %arg1: i32) -> (i32, i32, i32) {
    %c0_i32 = arith.constant 0 : i32
    %c0_i32_0 = arith.constant 0 : i32
    return %arg0, %arg1, %c0_i32 : i32, i32, i32
  }
  func.func @transform_1(%arg0: i32, %arg1: i32) -> (i32, i32) {
    %c0_i32 = arith.constant 0 : i32
    %c0_i32_0 = arith.constant 0 : i32
    return %arg0, %c0_i32 : i32, i32
  }
  func.func @transform_2(%arg0: i32, %arg1: i32) -> (i32, i32) {
    %c0_i32 = arith.constant 0 : i32
    %c0_i32_0 = arith.constant 0 : i32
    %c0_i32_1 = arith.constant 0 : i32
    return %c0_i32, %c0_i32_0 : i32, i32
  }
  func.func @transform_3(%arg0: i32, %arg1: i32) -> (i32, i32) {
    %c0_i32 = arith.constant 0 : i32
    %c0_i32_0 = arith.constant 0 : i32
    %c0_i32_1 = arith.constant 0 : i32
    return %c0_i32, %c0_i32_0 : i32, i32
  }
  func.func @transform_4(%arg0: i32, %arg1: i32) -> i32 {
    %c0_i32 = arith.constant 0 : i32
    %c0_i32_0 = arith.constant 0 : i32
    return %c0_i32 : i32
  }
  func.func @transform_5(%arg0: i32, %arg1: i32) -> (i32, i32) {
    %c0_i32 = arith.constant 0 : i32
    return %arg0, %arg1 : i32, i32
  }
  func.func @transform_6(%arg0: i32, %arg1: i32) -> (i32, i32) {
    %c0_i32 = arith.constant 0 : i32
    %c0_i32_0 = arith.constant 0 : i32
    return %arg0, %c0_i32 : i32, i32
  }
}

</mosaic_0001>

<llo_original>
// kernel: tpu_custom_call.1
$region0: #{tpu_custom_call.1}
  #allocation0 [shape = 'u32[]', space=smem, size = 0x4, offset = 0x4, fixed_abs, tag = 'smem constant byte address 0x4 - core index']
  #allocation1 [shape = 'u32[72,128]{1,0:T(1,128)}', space=vmem, size = 0x9000, scoped, tag = 'internal scratch']
  #allocation2 [shape = 'f32[1]{0:T(128)S(6)}', space=smem, size = 0x200, scoped, tag = 'scoped memory for tpu_custom_call.1']
  %s0 = inlined_call_operand.hbm [shape: bf16[16,8,32], index: 0, kind: input, shape index: {}]
  %s1 = inlined_call_operand.hbm [shape: f32[16,32], index: 1, kind: input, shape index: {}]
  %s2 = inlined_call_operand.hbm [shape: bf16[32,32], index: 2, kind: input, shape index: {}]
  %s3 = inlined_call_operand.vmem [shape: f32[1,32], index: 3, kind: input, shape index: {}]
  %s4 = inlined_call_operand.<no memory space> [shape: f32[1], index: 4, kind: input, shape index: {}]
  %s5 = inlined_call_operand.vmem [shape: f32[16,8], index: 5, kind: output, shape index: {0}]
  %s6 = inlined_call_operand.vmem [shape: f32[16,1], index: 6, kind: output, shape index: {1}]
  %7 = xla_tuple %s5, %s6
  %s8 = sld [smem:[#allocation0]]
  $region77: #{tpu_custom_call.1} parent=0
    _
  %s10 = ssub.s32 1, %s8
  %s11 = scalar_select 0, %s10, %s8
  %12 = sst [smem:[#allocation2]] %s4
  $region1: #{tpu_custom_call.1} parent=0
    #allocation3 [shape = 'u8[32768]{0}', space=vmem, size = 0x8000, scoped, tag = 'input window, operand 0']
    #allocation4 [shape = 's32[2]{0}', space=sflag, size = 0x8, scoped, tag = 'scoped memory for tpu_custom_call.1']
    #allocation5 [shape = 'u8[8192]{0}', space=vmem, size = 0x2000, scoped, tag = 'input window, operand 1']
    #allocation6 [shape = 's32[2]{0}', space=sflag, size = 0x8, scoped, tag = 'scoped memory for tpu_custom_call.1']
    #allocation7 [shape = 'u8[8192]{0}', space=vmem, size = 0x2000, scoped, tag = 'input window, operand 2, single buffered']
    %13 = vsyncpa [#allocation4], 0
    %s14 = scalar_lea.sflag [#allocation4], 1
    %15 = vsyncpa %s14, 0
    %16 = vsyncpa [#allocation6], 0
    %s17 = scalar_lea.sflag [#allocation6], 1
    %18 = vsyncpa %s17, 0
    loop: start=0, step=1, limit=4
    $region2: #{tpu_custom_call.1} parent=1 // loop_pre_header
      _
    $region3: #{tpu_custom_call.1} parent=1 // loop_header
      %s20 = sphi 0, %s24
      %p21 = scmp.ge.s32.totalorder %s20, 4
      %s27 = sphi 0, %s39
      %s28 = sphi 0, %s35
      %s29 = sphi 0, %s27
      %s30 = sphi 0, %s28
      %s31 = sphi 0, %s29
      %s32 = sphi 0, %s30
      %s44 = sphi 0, %s46
      %s47 = sphi 0, %s44
      %s48 = sphi 0, %s47
      %s64 = sphi 0, %s48
      %s70 = sphi 0, %s72
      %s73 = sphi 0, %s70
      %s74 = sphi 0, %s73
      %s90 = sphi 0, %s74
      %s94 = sphi 0, %s94
      %s96 = sphi 0, %s94
      %s97 = sphi 0, %s96
      %s111 = sphi 0, %s97
      %s115 = sphi 0, %s115
      %s117 = sphi 0, %s115
      %s118 = sphi 0, %s117
      %s132 = sphi 0, %s118
      %s136 = sphi 0, %s136
      %s138 = sphi 0, %s136
      %s139 = sphi 0, %s138
      %s153 = sphi 0, %s139
      %s161 = sphi 0, %s163
      %s164 = sphi 0, %s161
      %s165 = sphi 0, %s164
      %s181 = sphi 0, %s165
      %s187 = sphi 0, %s189
      %s190 = sphi 0, %s187
      %s191 = sphi 0, %s190
      %s207 = sphi 0, %s191
    $region4: #{tpu_custom_call.1} parent=1 // loop_header_branch
      %23 = sbr.rel (%p21) target = $region8
    $region5: #{tpu_custom_call.1} parent=1 // loop_body
      %s25 = ssub.s32 %s20, 1
      %s26 = ssub.s32 %s20, 2
      %s33 = sadd.s32 1, %s28
      %p34 = scmp.ge.s32.totalorder %s33, 1
      %s35 = scalar_select %p34, 0, %s33
      %s36 = sadd.s32 1, %s27
      %s37 = scalar_select %p34, %s36, %s27
      %p38 = scmp.ge.s32.totalorder %s37, 2
      %s39 = scalar_select %p38, 0, %s37
      %s40 = ssub.s32 %s27, %s39
      %s41 = ssub.s32 %s28, %s35
      %s42 = sor.u32 %s40, %s41
      %p43 = scmp.eq.s32.totalorder %s42, 0
      %s45 = sadd.s32 %s44, 1
      %s46 = scalar_select %p43, %s44, %s45
      %p49 = pneg %p43
      %p50 = scmp.eq.s32.totalorder %s20, 1
      %p51 = por %p49, %p50
      %p52 = scmp.ne.s32.totalorder %s44, %s47
      %p53 = scmp.eq.s32.totalorder %s20, 0
      %p54 = por %p52, %p53
      %p55 = scmp.ne.s32.totalorder %s44, %s47
      %p56 = scmp.eq.s32.totalorder %s25, 1
      %p57 = por %p55, %p56
      %p58 = scmp.ne.s32.totalorder %s47, %s48
      %p59 = scmp.eq.s32.totalorder %s25, 0
      %p60 = por %p58, %p59
      %p61 = scmp.ne.s32.totalorder %s47, %s48
      %p62 = scmp.eq.s32.totalorder %s26, 1
      %p63 = por %p61, %p62
      %p65 = scmp.ne.s32.totalorder %s48, %s64
      %p66 = scmp.eq.s32.totalorder %s26, 0
      %p67 = por %p65, %p66
      %s68 = ssub.s32 %s27, %s39
      %p69 = scmp.eq.s32.totalorder %s68, 0
      %s71 = sadd.s32 %s70, 1
      %s72 = scalar_select %p69, %s70, %s71
      %p75 = pneg %p69
      %p76 = scmp.eq.s32.totalorder %s20, 1
      %p77 = por %p75, %p76
      %p78 = scmp.ne.s32.totalorder %s70, %s73
      %p79 = scmp.eq.s32.totalorder %s20, 0
      %p80 = por %p78, %p79
      %p81 = scmp.ne.s32.totalorder %s70, %s73
      %p82 = scmp.eq.s32.totalorder %s25, 1
      %p83 = por %p81, %p82
      %p84 = scmp.ne.s32.totalorder %s73, %s74
      %p85 = scmp.eq.s32.totalorder %s25, 0
      %p86 = por %p84, %p85
      %p87 = scmp.ne.s32.totalorder %s73, %s74
      %p88 = scmp.eq.s32.totalorder %s26, 1
      %p89 = por %p87, %p88
      %p91 = scmp.ne.s32.totalorder %s74, %s90
      %p92 = scmp.eq.s32.totalorder %s26, 0
      %p93 = por %p91, %p92
      %s95 = sadd.s32 %s94, 1
      %p98 = scmp.eq.s32.totalorder %s20, 1
      %p99 = scmp.ne.s32.totalorder %s94, %s96
      %p100 = scmp.eq.s32.totalorder %s20, 0
      %p101 = por %p99, %p100
      %p102 = scmp.ne.s32.totalorder %s94, %s96
      %p103 = scmp.eq.s32.totalorder %s25, 1
      %p104 = por %p102, %p103
      %p105 = scmp.ne.s32.totalorder %s96, %s97
      %p106 = scmp.eq.s32.totalorder %s25, 0
      %p107 = por %p105, %p106
      %p108 = scmp.ne.s32.totalorder %s96, %s97
      %p109 = scmp.eq.s32.totalorder %s26, 1
      %p110 = por %p108, %p109
      %p112 = scmp.ne.s32.totalorder %s97, %s111
      %p113 = scmp.eq.s32.totalorder %s26, 0
      %p114 = por %p112, %p113
      %s116 = sadd.s32 %s115, 1
      %p119 = scmp.eq.s32.totalorder %s20, 1
      %p120 = scmp.ne.s32.totalorder %s115, %s117
      %p121 = scmp.eq.s32.totalorder %s20, 0
      %p122 = por %p120, %p121
      %p123 = scmp.ne.s32.totalorder %s115, %s117
      %p124 = scmp.eq.s32.totalorder %s25, 1
      %p125 = por %p123, %p124
      %p126 = scmp.ne.s32.totalorder %s117, %s118
      %p127 = scmp.eq.s32.totalorder %s25, 0
      %p128 = por %p126, %p127
      %p129 = scmp.ne.s32.totalorder %s117, %s118
      %p130 = scmp.eq.s32.totalorder %s26, 1
      %p131 = por %p129, %p130
      %p133 = scmp.ne.s32.totalorder %s118, %s132
      %p134 = scmp.eq.s32.totalorder %s26, 0
      %p135 = por %p133, %p134
      %s137 = sadd.s32 %s136, 1
      %p140 = scmp.eq.s32.totalorder %s20, 1
      %p141 = scmp.ne.s32.totalorder %s136, %s138
      %p142 = scmp.eq.s32.totalorder %s20, 0
      %p143 = por %p141, %p142
      %p144 = scmp.ne.s32.totalorder %s136, %s138
      %p145 = scmp.eq.s32.totalorder %s25, 1
      %p146 = por %p144, %p145
      %p147 = scmp.ne.s32.totalorder %s138, %s139
      %p148 = scmp.eq.s32.totalorder %s25, 0
      %p149 = por %p147, %p148
      %p150 = scmp.ne.s32.totalorder %s138, %s139
      %p151 = scmp.eq.s32.totalorder %s26, 1
      %p152 = por %p150, %p151
      %p154 = scmp.ne.s32.totalorder %s139, %s153
      %p155 = scmp.eq.s32.totalorder %s26, 0
      %p156 = por %p154, %p155
      %s157 = ssub.s32 %s27, %s39
      %s158 = ssub.s32 %s28, %s35
      %s159 = sor.u32 %s157, %s158
      %p160 = scmp.eq.s32.totalorder %s159, 0
      %s162 = sadd.s32 %s161, 1
      %s163 = scalar_select %p160, %s161, %s162
      %p166 = pneg %p160
      %p167 = scmp.eq.s32.totalorder %s20, 1
      %p168 = por %p166, %p167
      %p169 = scmp.ne.s32.totalorder %s161, %s164
      %p170 = scmp.eq.s32.totalorder %s20, 0
      %p171 = por %p169, %p170
      %p172 = scmp.ne.s32.totalorder %s161, %s164
      %p173 = scmp.eq.s32.totalorder %s25, 1
      %p174 = por %p172, %p173
      %p175 = scmp.ne.s32.totalorder %s164, %s165
      %p176 = scmp.eq.s32.totalorder %s25, 0
      %p177 = por %p175, %p176
      %p178 = scmp.ne.s32.totalorder %s164, %s165
      %p179 = scmp.eq.s32.totalorder %s26, 1
      %p180 = por %p178, %p179
      %p182 = scmp.ne.s32.totalorder %s165, %s181
      %p183 = scmp.eq.s32.totalorder %s26, 0
      %p184 = por %p182, %p183
      %s185 = ssub.s32 %s27, %s39
      %p186 = scmp.eq.s32.totalorder %s185, 0
      %s188 = sadd.s32 %s187, 1
      %s189 = scalar_select %p186, %s187, %s188
      %p192 = pneg %p186
      %p193 = scmp.eq.s32.totalorder %s20, 1
      %p194 = por %p192, %p193
      %p195 = scmp.ne.s32.totalorder %s187, %s190
      %p196 = scmp.eq.s32.totalorder %s20, 0
      %p197 = por %p195, %p196
      %p198 = scmp.ne.s32.totalorder %s187, %s190
      %p199 = scmp.eq.s32.totalorder %s25, 1
      %p200 = por %p198, %p199
      %p201 = scmp.ne.s32.totalorder %s190, %s191
      %p202 = scmp.eq.s32.totalorder %s25, 0
      %p203 = por %p201, %p202
      %p204 = scmp.ne.s32.totalorder %s190, %s191
      %p205 = scmp.eq.s32.totalorder %s26, 1
      %p206 = por %p204, %p205
      %p208 = scmp.ne.s32.totalorder %s191, %s207
      %p209 = scmp.eq.s32.totalorder %s26, 0
      %p210 = por %p208, %p209
      %p211 = scmp.le.s32.totalorder 1, %s20
      %p212 = scmp.lt.s32.totalorder %s20, 3
      %p213 = pnand %p211, %p212
      %p214 = pneg %p213
      // Predicated region
      $region9: #{tpu_custom_call.1} parent=5 // pred_check
        _
      $region10: #{tpu_custom_call.1} parent=5 // pred_check_branch
        %216 = sbr.rel (%p213) target = $region12
      $region11: #{tpu_custom_call.1} parent=5 // pred_region
        %s217 = ssub.s32 %s20, 1
        // Predicated region
        $region13: #{tpu_custom_call.1} parent=11 // pred_check
          %p218 = pneg %p107
        $region14: #{tpu_custom_call.1} parent=11 // pred_check_branch
          %220 = sbr.rel (%p218) target = $region16
        $region15: #{tpu_custom_call.1} parent=11 // pred_region
          %222 = vsyncadd [#allocation6], 0
          %s223 = sshll.u32 %s2, 4
          %s224 = int_to_ptr.hbm [resolvable:$true] %s223
          %s225 = sshll.u32 [#allocation7], 4
          %s226 = int_to_ptr.vmem [resolvable:$true] %s225
          %231 = dma.hbm_to_vmem [thread:$0]  %s224, 256, %s226, [#allocation6], 64, 64, 4
        $region16: #{tpu_custom_call.1} parent=11 // pred_fallthru
          _
        // Predicated region
        $region17: #{tpu_custom_call.1} parent=11 // pred_check
          %p232 = pneg %p128
        $region18: #{tpu_custom_call.1} parent=11 // pred_check_branch
          %234 = sbr.rel (%p232) target = $region20
        $region19: #{tpu_custom_call.1} parent=11 // pred_region
          _
        $region20: #{tpu_custom_call.1} parent=11 // pred_fallthru
          _
        // Predicated region
        $region21: #{tpu_custom_call.1} parent=11 // pred_check
          %p235 = pneg %p149
        $region22: #{tpu_custom_call.1} parent=11 // pred_check_branch
          %237 = sbr.rel (%p235) target = $region24
        $region23: #{tpu_custom_call.1} parent=11 // pred_region
          _
        $region24: #{tpu_custom_call.1} parent=11 // pred_fallthru
          _
      $region12: #{tpu_custom_call.1} parent=5 // pred_fallthru
        _
      %p238 = scmp.lt.s32.totalorder %s20, 2
      // Predicated region
      $region25: #{tpu_custom_call.1} parent=5 // pred_check
        %p239 = pneg %p238
      $region26: #{tpu_custom_call.1} parent=5 // pred_check_branch
        %241 = sbr.rel (%p239) target = $region28
      $region27: #{tpu_custom_call.1} parent=5 // pred_region
        // Predicated region
        $region29: #{tpu_custom_call.1} parent=27 // pred_check
          %p242 = pneg %p54
        $region30: #{tpu_custom_call.1} parent=27 // pred_check_branch
          %244 = sbr.rel (%p242) target = $region32
        $region31: #{tpu_custom_call.1} parent=27 // pred_region
          %s245 = sand.u32 %s44, 1
          %s246 = scalar_lea.sflag [#allocation4], %s245
          %s247 = sand.u32 %s44, 1
          %s248 = smul.addr %s247, 32
          %s249 = scalar_lea.vmem [#allocation3], %s248
          %s250 = smul.u32 8, %s27
          %252 = vsyncadd %s246, 0
          %s253 = sadd.s32 %s28, %s250
          %s254 = smul.addr %s253, 4
          %s255 = scalar_lea.hbm %s0, %s254
          %s256 = sshll.u32 %s255, 4
          %s257 = int_to_ptr.hbm [resolvable:$true] %s256
          %s258 = sshll.u32 %s249, 4
          %s259 = int_to_ptr.vmem [resolvable:$true] %s258
          %264 = dma.hbm_to_vmem [thread:$0]  %s257, 512, %s259, %s246, 64, 64, 4
        $region32: #{tpu_custom_call.1} parent=27 // pred_fallthru
          _
        // Predicated region
        $region33: #{tpu_custom_call.1} parent=27 // pred_check
          %p265 = pneg %p80
        $region34: #{tpu_custom_call.1} parent=27 // pred_check_branch
          %267 = sbr.rel (%p265) target = $region36
        $region35: #{tpu_custom_call.1} parent=27 // pred_region
          %s268 = sand.u32 %s20, 1
          %s269 = scalar_lea.sflag [#allocation6], %s268
          %s270 = sand.u32 %s70, 1
          %s271 = smul.addr %s270, 8
          %s272 = scalar_lea.vmem [#allocation5], %s271
          %274 = vsyncadd %s269, 0
          %s275 = smul.addr %s27, 8
          %s276 = scalar_lea.hbm %s1, %s275
          %s278 = sshll.u32 %s276, 4
          %s279 = int_to_ptr.hbm [resolvable:$true] %s278
          %s280 = sshll.u32 %s272, 4
          %s281 = int_to_ptr.vmem [resolvable:$true] %s280
          %283 = dma.hbm_to_vmem [thread:$0]  %s279, 128, %s281, %s269
        $region36: #{tpu_custom_call.1} parent=27 // pred_fallthru
          _
      $region28: #{tpu_custom_call.1} parent=5 // pred_fallthru
        _
      %p284 = scmp.le.s32.totalorder 1, %s20
      %p285 = scmp.lt.s32.totalorder %s20, 3
      %p286 = pnand %p284, %p285
      %p287 = pneg %p286
      // Predicated region
      $region37: #{tpu_custom_call.1} parent=5 // pred_check
        _
      $region38: #{tpu_custom_call.1} parent=5 // pred_check_branch
        %289 = sbr.rel (%p286) target = $region40
      $region39: #{tpu_custom_call.1} parent=5 // pred_region
        %s290 = ssub.s32 %s20, 1
        %s291 = sand.u32 %s47, 1
        %s292 = scalar_lea.sflag [#allocation4], %s291
        %s293 = sand.u32 %s47, 1
        %s294 = smul.addr %s293, 32
        %s295 = scalar_lea.vmem [#allocation3], %s294
        // Predicated region
        $region41: #{tpu_custom_call.1} parent=39 // pred_check
          %p296 = pneg %p60
        $region42: #{tpu_custom_call.1} parent=39 // pred_check_branch
          %298 = sbr.rel (%p296) target = $region44
        $region43: #{tpu_custom_call.1} parent=39 // pred_region
          %300 = dma.done %s292, 512
        $region44: #{tpu_custom_call.1} parent=39 // pred_fallthru
          _
        %s301 = sand.u32 %s25, 1
        %s302 = scalar_lea.sflag [#allocation6], %s301
        %s303 = sand.u32 %s73, 1
        %s304 = smul.addr %s303, 8
        %s305 = scalar_lea.vmem [#allocation5], %s304
        // Predicated region
        $region45: #{tpu_custom_call.1} parent=39 // pred_check
          %p306 = pneg %p86
        $region46: #{tpu_custom_call.1} parent=39 // pred_check_branch
          %308 = sbr.rel (%p306) target = $region48
        $region47: #{tpu_custom_call.1} parent=39 // pred_region
          %310 = dma.done %s302, 128
        $region48: #{tpu_custom_call.1} parent=39 // pred_fallthru
          _
        // Predicated region
        $region49: #{tpu_custom_call.1} parent=39 // pred_check
          %p311 = pneg %p107
        $region50: #{tpu_custom_call.1} parent=39 // pred_check_branch
          %313 = sbr.rel (%p311) target = $region52
        $region51: #{tpu_custom_call.1} parent=39 // pred_region
          %315 = dma.done [#allocation6], 256
        $region52: #{tpu_custom_call.1} parent=39 // pred_fallthru
          _
        %s316 = sand.u32 %s47, 1
        %s317 = scalar_lea.sflag [#allocation4], %s316
        %s318 = sand.u32 %s47, 1
        %s319 = smul.addr %s318, 32
        %s320 = scalar_lea.vmem [#allocation3], %s319
        %p321 = pneg %p60
        %p322 = pneg %p57
        %s323 = sand.u32 %s25, 1
        %s324 = scalar_lea.sflag [#allocation6], %s323
        %s325 = sand.u32 %s73, 1
        %s326 = smul.addr %s325, 8
        %s327 = scalar_lea.vmem [#allocation5], %s326
        %p328 = pneg %p86
        %p329 = pneg %p83
        %p330 = pneg %p107
        %p331 = pneg %p104
        %p332 = pneg %p128
        %p333 = pneg %p125
        %p334 = pneg %p149
        %p335 = pneg %p146
        %p336 = pneg %p177
        %p337 = pneg %p174
        %p338 = scmp.lt.s32.totalorder %s29, 1
        %s339 = scalar_select %p338, %s29, 1
        %p340 = scmp.lt.s32.totalorder %s30, 0
        %s341 = scalar_select %p340, %s30, 0
        %s342 = sadd.s32 %s341, %s339
        %s343 = smul.addr %s342, 8
        %s344 = scalar_lea.vmem %s5, %s343
        %p345 = pneg %p203
        %p346 = pneg %p200
        %p347 = scmp.lt.s32.totalorder %s29, 1
        %s348 = scalar_select %p347, %s29, 1
        %s349 = smul.addr %s348, 8
        %s350 = scalar_lea.vmem %s6, %s349
        %s351 = smul.u32 8, %s29
        %p352 = scmp.lt.s32.totalorder %s29, 1
        %s353 = scalar_select %p352, %s29, 1
        %p354 = scmp.lt.s32.totalorder %s30, 0
        %s355 = scalar_select %p354, %s30, 0
        %s356 = sadd.s32 %s355, %s353
        %s357 = smul.addr %s356, 8
        %s358 = scalar_lea.vmem %s5, %s357
        %p359 = scmp.lt.s32.totalorder %s29, 1
        %s360 = scalar_select %p359, %s29, 1
        %s361 = smul.addr %s360, 8
        %s362 = scalar_lea.vmem %s6, %s361
        %p364 = scmp.eq.s32.totalorder %s30, 0
        // Predicated region
        $region53: #{tpu_custom_call.1} parent=39 // pred_check
          %p365 = pneg %p364
        $region54: #{tpu_custom_call.1} parent=39 // pred_check_branch
          %367 = sbr.rel (%p365) target = $region56
        $region55: #{tpu_custom_call.1} parent=39 // pred_region
          %vm368 = vcmask 7168
          %369 = vst.msk [vmem:[%s362] sm:$0xff] %vm368, 0.0
        $region56: #{tpu_custom_call.1} parent=39 // pred_fallthru
          _
        %v370 = vld [vmem:[%s295] sm:$0xf]
        %v371 = vld [vmem:[%s295 + $0x4] sm:$0xf]
        %v372 = vld [vmem:[%s295 + $0x8] sm:$0xf]
        %v373 = vld [vmem:[%s295 + $0xc] sm:$0xf]
        %v374 = vld [vmem:[%s295 + $0x10] sm:$0xf]
        %v375 = vld [vmem:[%s295 + $0x14] sm:$0xf]
        %v376 = vld [vmem:[%s295 + $0x18] sm:$0xf]
        %v377 = vld [vmem:[%s295 + $0x1c] sm:$0xf]
        %v378 = vld [vmem:[#allocation7] sm:$0xf]
        %v379 = vld [vmem:[#allocation7 + $0x4] sm:$0xf]
        %v380 = vld [vmem:[#allocation7 + $0x8] sm:$0xf]
        %v381 = vld [vmem:[#allocation7 + $0xc] sm:$0xf]
        %v390 = vunpack.c.l.b16 %v370
        %v391 = vunpack.c.l.b16 %v371
        %v392 = vunpack.c.l.b16 %v372
        %v393 = vunpack.c.l.b16 %v373
        %v394 = vunpack.c.l.b16 %v374
        %v395 = vunpack.c.l.b16 %v375
        %v396 = vunpack.c.l.b16 %v376
        %v397 = vunpack.c.l.b16 %v377
        %v398 = vpack.c.b16 %v391, %v390
        %v399 = vpack.c.b16 %v393, %v392
        %v400 = vpack.c.b16 %v395, %v394
        %v401 = vpack.c.b16 %v397, %v396
        %v406 = vunpack.c.l.b16 %v378
        %v407 = vunpack.c.l.b16 %v379
        %v408 = vunpack.c.l.b16 %v380
        %v409 = vunpack.c.l.b16 %v381
        %v410 = vpack.c.b16 %v407, %v406
        %v411 = vpack.c.b16 %v409, %v408
        %vm414 = vcmask 261120
        %v416 = vsel %vm414, %v398, 0
        %v419 = vsel %vm414, %v399, 0
        %v422 = vsel %vm414, %v400, 0
        %v425 = vsel %vm414, %v401, 0
        %427 = vmatpush.bf16.msra.mxu0 0
        %428 = vmatpush.bf16.msra.mxu0 0
        %429 = vmatpush.bf16.msra.mxu0 0
        %430 = vmatpush.bf16.msra.mxu0 0
        %431 = vmatpush.bf16.msra.mxu0 0
        %432 = vmatpush.bf16.msra.mxu0 0
        %433 = vmatpush.bf16.msra.mxu0 %v411
        %434 = vmatpush.bf16.msra.mxu0 %v410
        %435 = vmatmul.bf16.gmra.mxu0 %v416
        %v436 = vpop.f32.mrf.mxu0
        %v437 = vadd.f32 0.0, %v436
        %v438 = vpop.f32.mrf.mxu0
        %v439 = vadd.f32 0.0, %v438
        %440 = vmatmul.bf16.gmra.mxu0 %v419
        %v441 = vpop.f32.mrf.mxu0
        %v442 = vadd.f32 0.0, %v441
        %v443 = vpop.f32.mrf.mxu0
        %v444 = vadd.f32 0.0, %v443
        %445 = vmatmul.bf16.gmra.mxu0 %v422
        %v446 = vpop.f32.mrf.mxu0
        %v447 = vadd.f32 0.0, %v446
        %v448 = vpop.f32.mrf.mxu0
        %v449 = vadd.f32 0.0, %v448
        %450 = vmatmul.bf16.gmra.mxu0 %v425
        %v451 = vpop.f32.mrf.mxu0
        %v452 = vadd.f32 0.0, %v451
        %v453 = vpop.f32.mrf.mxu0
        %v454 = vadd.f32 0.0, %v453
        %455 = vdwg.mxu0
        %v456 = vld [vmem:[%s305] sm:$0xff]
        %v458 = vrot.slane %v456, 1
        %v459 = vrot.slane %v456, 2
        %v460 = vrot.slane %v456, 3
        %v461 = vrot.slane %v456, 4
        %v462 = vrot.slane %v456, 5
        %v463 = vrot.slane %v456, 6
        %v464 = vrot.slane %v456, 7
        %v465 = vperm.slane %v456, 0
        %v466 = vperm.slane %v458, 0
        %v467 = vperm.slane %v459, 0
        %v468 = vperm.slane %v460, 0
        %v469 = vperm.slane %v461, 0
        %v470 = vperm.slane %v462, 0
        %v471 = vperm.slane %v463, 0
        %v472 = vperm.slane %v464, 0
        %v481 = vadd.f32 %v437, %v465
        %v482 = vadd.f32 %v439, %v466
        %v483 = vadd.f32 %v442, %v467
        %v484 = vadd.f32 %v444, %v468
        %v485 = vadd.f32 %v447, %v469
        %v486 = vadd.f32 %v449, %v470
        %v487 = vadd.f32 %v452, %v471
        %v488 = vadd.f32 %v454, %v472
        %v489 = vtanh.pop %v481
        %v490 = vtanh.pop %v482
        %v491 = vtanh.pop %v483
        %v492 = vtanh.pop %v484
        %v493 = vtanh.pop %v485
        %v494 = vtanh.pop %v486
        %v495 = vtanh.pop %v487
        %v496 = vtanh.pop %v488
        %v497 = vld [vmem:[%s3] sm:$0x1]
        %v499 = vperm.slane %v497, 0
        %v501 = vmul.f32 %v489, %v499
        %v502 = vmul.f32 %v490, %v499
        %v503 = vmul.f32 %v491, %v499
        %v504 = vmul.f32 %v492, %v499
        %v505 = vmul.f32 %v493, %v499
        %v506 = vmul.f32 %v494, %v499
        %v507 = vmul.f32 %v495, %v499
        %v508 = vmul.f32 %v496, %v499
        %v509 = vsel %vm414, %v501, 0.0
        %510 = vadd.xlane.f32.xlu0 %v509
        %v511 = vpop.xlane.xlu0 %510
        %v512 = vsel %vm414, %v502, 0.0
        %513 = vadd.xlane.f32.xlu0 %v512
        %v514 = vpop.xlane.xlu0 %513
        %v515 = vsel %vm414, %v503, 0.0
        %516 = vadd.xlane.f32.xlu0 %v515
        %v517 = vpop.xlane.xlu0 %516
        %v518 = vsel %vm414, %v504, 0.0
        %519 = vadd.xlane.f32.xlu0 %v518
        %v520 = vpop.xlane.xlu0 %519
        %v521 = vsel %vm414, %v505, 0.0
        %522 = vadd.xlane.f32.xlu0 %v521
        %v523 = vpop.xlane.xlu0 %522
        %v524 = vsel %vm414, %v506, 0.0
        %525 = vadd.xlane.f32.xlu0 %v524
        %v526 = vpop.xlane.xlu0 %525
        %v527 = vsel %vm414, %v507, 0.0
        %528 = vadd.xlane.f32.xlu0 %v527
        %v529 = vpop.xlane.xlu0 %528
        %v530 = vsel %vm414, %v508, 0.0
        %531 = vadd.xlane.f32.xlu0 %v530
        %v532 = vpop.xlane.xlu0 %531
        %s533 = sld [smem:[#allocation2]]
        %v534 = vstv %s533
        %v535 = vadd.f32 %v511, %v534
        %v536 = vadd.f32 %v514, %v534
        %v537 = vadd.f32 %v517, %v534
        %v538 = vadd.f32 %v520, %v534
        %v539 = vadd.f32 %v523, %v534
        %v540 = vadd.f32 %v526, %v534
        %v541 = vadd.f32 %v529, %v534
        %v542 = vadd.f32 %v532, %v534
        %s543 = smul.u32 %s30, 8
        %v544 = vlaneseq
        %v545 = vand.u32 %v544, 127
        %v546 = vstv %s543
        %v547 = vadd.s32 %v546, %v545
        %vm548 = vcmp.lt.s32.totalorder %v547, 8
        %v549 = vmul.f32 %v535, 0.1
        %v550 = vmul.f32 %v536, 0.1
        %v551 = vmul.f32 %v537, 0.1
        %v552 = vmul.f32 %v538, 0.1
        %v553 = vmul.f32 %v539, 0.1
        %v554 = vmul.f32 %v540, 0.1
        %v555 = vmul.f32 %v541, 0.1
        %v556 = vmul.f32 %v542, 0.1
        %v557 = vmul.f32 %v549, 1.442695
        %v558 = vpow.pop %v557
        %v559 = vmul.f32 %v550, 1.442695
        %v560 = vpow.pop %v559
        %v561 = vmul.f32 %v551, 1.442695
        %v562 = vpow.pop %v561
        %v563 = vmul.f32 %v552, 1.442695
        %v564 = vpow.pop %v563
        %v565 = vmul.f32 %v553, 1.442695
        %v566 = vpow.pop %v565
        %v567 = vmul.f32 %v554, 1.442695
        %v568 = vpow.pop %v567
        %v569 = vmul.f32 %v555, 1.442695
        %v570 = vpow.pop %v569
        %v571 = vmul.f32 %v556, 1.442695
        %v572 = vpow.pop %v571
        %v573 = vsel %vm548, 1, 0
        %vm574 = vcmp.eq.s32.totalorder %v573, 1
        %v583 = vperm.slane %v558, %v545
        %v584 = vperm.slane %v560, %v545
        %v585 = vperm.slane %v562, %v545
        %v586 = vperm.slane %v564, %v545
        %v587 = vperm.slane %v566, %v545
        %v588 = vperm.slane %v568, %v545
        %v589 = vperm.slane %v570, %v545
        %v590 = vperm.slane %v572, %v545
        %vm591 = vcmask 1041409
        %v592 = vsel %vm591, %v584, %v583
        %vm593 = vcmask 1042434
        %v594 = vsel %vm593, %v585, %v592
        %vm595 = vcmask 1043459
        %v596 = vsel %vm595, %v586, %v594
        %vm597 = vcmask 1044484
        %v598 = vsel %vm597, %v587, %v596
        %vm599 = vcmask 1045509
        %v600 = vsel %vm599, %v588, %v598
        %vm601 = vcmask 1046534
        %v602 = vsel %vm601, %v589, %v600
        %vm603 = vcmask 1047559
        %v604 = vsel %vm603, %v590, %v602
        %v606 = vsel %vm574, %v604, 0.0
        %vm607 = vcmask 64512
        %608 = vst.msk [vmem:[%s358] sm:$0xff] %vm607, %v606
        %v609 = vld [vmem:[%s362] sm:$0xff]
        %v610 = vsel %vm607, %v606, 0.0
        %611 = vadd.xlane.f32.xlu0 %v610
        %v612 = vpop.xlane.xlu0 %611
        %v613 = vadd.f32 %v609, %v612
        %vm614 = vcmask 7168
        %615 = vst.msk [vmem:[%s362] sm:$0xff] %vm614, %v613
        %p616 = scmp.lt.s32.totalorder %s29, 1
        %s617 = scalar_select %p616, %s29, 1
        %p618 = scmp.lt.s32.totalorder %s30, 0
        %s619 = scalar_select %p618, %s30, 0
        %s620 = sadd.s32 %s619, %s617
        %s621 = smul.addr %s620, 8
        %s622 = scalar_lea.vmem %s5, %s621
        %p623 = scmp.lt.s32.totalorder %s29, 1
        %s624 = scalar_select %p623, %s29, 1
        %s625 = smul.addr %s624, 8
        %s626 = scalar_lea.vmem %s6, %s625
        // Predicated region
        $region57: #{tpu_custom_call.1} parent=39 // pred_check
          %p627 = pneg %p174
        $region58: #{tpu_custom_call.1} parent=39 // pred_check_branch
          %629 = sbr.rel (%p627) target = $region60
        $region59: #{tpu_custom_call.1} parent=39 // pred_region
          _
        $region60: #{tpu_custom_call.1} parent=39 // pred_fallthru
          _
        // Predicated region
        $region61: #{tpu_custom_call.1} parent=39 // pred_check
          %p630 = pneg %p200
        $region62: #{tpu_custom_call.1} parent=39 // pred_check_branch
          %632 = sbr.rel (%p630) target = $region64
        $region63: #{tpu_custom_call.1} parent=39 // pred_region
          _
        $region64: #{tpu_custom_call.1} parent=39 // pred_fallthru
          _
      $region40: #{tpu_custom_call.1} parent=5 // pred_fallthru
        _
      %p633 = scmp.le.s32.totalorder 2, %s20
      // Predicated region
      $region65: #{tpu_custom_call.1} parent=5 // pred_check
        %p634 = pneg %p633
      $region66: #{tpu_custom_call.1} parent=5 // pred_check_branch
        %636 = sbr.rel (%p634) target = $region68
      $region67: #{tpu_custom_call.1} parent=5 // pred_region
        %s637 = ssub.s32 %s20, 2
        // Predicated region
        $region69: #{tpu_custom_call.1} parent=67 // pred_check
          %p638 = pneg %p180
        $region70: #{tpu_custom_call.1} parent=67 // pred_check_branch
          %640 = sbr.rel (%p638) target = $region72
        $region71: #{tpu_custom_call.1} parent=67 // pred_region
          %p641 = scmp.lt.s32.totalorder %s31, 1
          %s642 = scalar_select %p641, %s31, 1
          %p643 = scmp.lt.s32.totalorder %s32, 0
          %s644 = scalar_select %p643, %s32, 0
          %s645 = sadd.s32 %s644, %s642
          %s646 = smul.addr %s645, 8
          %s647 = scalar_lea.vmem %s5, %s646
        $region72: #{tpu_custom_call.1} parent=67 // pred_fallthru
          _
        // Predicated region
        $region73: #{tpu_custom_call.1} parent=67 // pred_check
          %p648 = pneg %p206
        $region74: #{tpu_custom_call.1} parent=67 // pred_check_branch
          %650 = sbr.rel (%p648) target = $region76
        $region75: #{tpu_custom_call.1} parent=67 // pred_region
          %p651 = scmp.lt.s32.totalorder %s31, 1
          %s652 = scalar_select %p651, %s31, 1
          %s653 = smul.addr %s652, 8
          %s654 = scalar_lea.vmem %s6, %s653
        $region76: #{tpu_custom_call.1} parent=67 // pred_fallthru
          _
      $region68: #{tpu_custom_call.1} parent=5 // pred_fallthru
        _
    $region6: #{tpu_custom_call.1} parent=1 // loop_footer
      %s24 = sadd.s32 1, %s20
    $region7: #{tpu_custom_call.1} parent=1 // loop_footer_branch
      %19 = sbr.rel target = $region3
    $region8: #{tpu_custom_call.1} parent=1 // loop_exit
      _
    %655 = vsyncpa [#allocation4], 1
    %s656 = scalar_lea.sflag [#allocation4], 1
    %657 = vsyncpa %s656, 1
    %658 = vsyncpa [#allocation6], 1
    %s659 = scalar_lea.sflag [#allocation6], 1
    %660 = vsyncpa %s659, 1

// kernel: tpu_custom_call.1
$region0: #{tpu_custom_call.1}
  #allocation0 [shape = 'u32[]', space=smem, size = 0x4, offset = 0x4, fixed_abs, tag = 'smem constant byte address 0x4 - core index']
  #allocation1 [shape = 'u32[72,128]{1,0:T(1,128)}', space=vmem, size = 0x9000, scoped, tag = 'internal scratch']
  #allocation2 [shape = 'f32[1]{0:T(128)S(6)}', space=smem, size = 0x200, scoped, tag = 'scoped memory for tpu_custom_call.1']
  %s0 = inlined_call_operand.hbm [shape: bf16[16,8,32], index: 0, kind: input, shape index: {}]
  %s1 = inlined_call_operand.hbm [shape: f32[16,32], index: 1, kind: input, shape index: {}]
  %s2 = inlined_call_operand.hbm [shape: bf16[32,32], index: 2, kind: input, shape index: {}]
  %s3 = inlined_call_operand.vmem [shape: f32[1,32], index: 3, kind: input, shape index: {}]
  %s4 = inlined_call_operand.<no memory space> [shape: f32[1], index: 4, kind: input, shape index: {}]
  %s5 = inlined_call_operand.vmem [shape: f32[16,8], index: 5, kind: output, shape index: {0}]
  %s6 = inlined_call_operand.vmem [shape: f32[16,1], index: 6, kind: output, shape index: {1}]
  %7 = xla_tuple %s5, %s6
  %s8 = sld [smem:[#allocation0]]
  $region77: #{tpu_custom_call.1} parent=0
    _
  %s10 = ssub.s32 1, %s8
  %s11 = scalar_select 0, %s10, %s8
  %12 = sst [smem:[#allocation2]] %s4
  $region1: #{tpu_custom_call.1} parent=0
    #allocation3 [shape = 'u8[32768]{0}', space=vmem, size = 0x8000, scoped, tag = 'input window, operand 0']
    #allocation4 [shape = 's32[2]{0}', space=sflag, size = 0x8, scoped, tag = 'scoped memory for tpu_custom_call.1']
    #allocation5 [shape = 'u8[8192]{0}', space=vmem, size = 0x2000, scoped, tag = 'input window, operand 1']
    #allocation6 [shape = 's32[2]{0}', space=sflag, size = 0x8, scoped, tag = 'scoped memory for tpu_custom_call.1']
    #allocation7 [shape = 'u8[8192]{0}', space=vmem, size = 0x2000, scoped, tag = 'input window, operand 2, single buffered']
    %13 = vsyncpa [#allocation4], 0
    %s14 = scalar_lea.sflag [#allocation4], 1
    %15 = vsyncpa %s14, 0
    %16 = vsyncpa [#allocation6], 0
    %s17 = scalar_lea.sflag [#allocation6], 1
    %18 = vsyncpa %s17, 0
    loop: start=0, step=1, limit=4
    $region2: #{tpu_custom_call.1} parent=1 // loop_pre_header
      _
    $region3: #{tpu_custom_call.1} parent=1 // loop_header
      %s20 = sphi 0, %s24
      %p21 = scmp.ge.s32.totalorder %s20, 4
      %s27 = sphi 0, %s39
      %s28 = sphi 0, %s35
      %s29 = sphi 0, %s27
      %s30 = sphi 0, %s28
      %s31 = sphi 0, %s29
      %s32 = sphi 0, %s30
      %s44 = sphi 0, %s46
      %s47 = sphi 0, %s44
      %s48 = sphi 0, %s47
      %s64 = sphi 0, %s48
      %s70 = sphi 0, %s72
      %s73 = sphi 0, %s70
      %s74 = sphi 0, %s73
      %s90 = sphi 0, %s74
      %s94 = sphi 0, %s94
      %s96 = sphi 0, %s94
      %s97 = sphi 0, %s96
      %s111 = sphi 0, %s97
      %s115 = sphi 0, %s115
      %s117 = sphi 0, %s115
      %s118 = sphi 0, %s117
      %s132 = sphi 0, %s118
      %s136 = sphi 0, %s136
      %s138 = sphi 0, %s136
      %s139 = sphi 0, %s138
      %s153 = sphi 0, %s139
      %s161 = sphi 0, %s163
      %s164 = sphi 0, %s161
      %s165 = sphi 0, %s164
      %s181 = sphi 0, %s165
      %s187 = sphi 0, %s189
      %s190 = sphi 0, %s187
      %s191 = sphi 0, %s190
      %s207 = sphi 0, %s191
    $region4: #{tpu_custom_call.1} parent=1 // loop_header_branch
      %23 = sbr.rel (%p21) target = $region8
    $region5: #{tpu_custom_call.1} parent=1 // loop_body
      %s25 = ssub.s32 %s20, 1
      %s26 = ssub.s32 %s20, 2
      %s33 = sadd.s32 1, %s28
      %p34 = scmp.ge.s32.totalorder %s33, 1
      %s35 = scalar_select %p34, 0, %s33
      %s36 = sadd.s32 1, %s27
      %s37 = scalar_select %p34, %s36, %s27
      %p38 = scmp.ge.s32.totalorder %s37, 2
      %s39 = scalar_select %p38, 0, %s37
      %s40 = ssub.s32 %s27, %s39
      %s41 = ssub.s32 %s28, %s35
      %s42 = sor.u32 %s40, %s41
      %p43 = scmp.eq.s32.totalorder %s42, 0
      %s45 = sadd.s32 %s44, 1
      %s46 = scalar_select %p43, %s44, %s45
      %p49 = pneg %p43
      %p50 = scmp.eq.s32.totalorder %s20, 1
      %p51 = por %p49, %p50
      %p52 = scmp.ne.s32.totalorder %s44, %s47
      %p53 = scmp.eq.s32.totalorder %s20, 0
      %p54 = por %p52, %p53
      %p55 = scmp.ne.s32.totalorder %s44, %s47
      %p56 = scmp.eq.s32.totalorder %s25, 1
      %p57 = por %p55, %p56
      %p58 = scmp.ne.s32.totalorder %s47, %s48
      %p59 = scmp.eq.s32.totalorder %s25, 0
      %p60 = por %p58, %p59
      %p61 = scmp.ne.s32.totalorder %s47, %s48
      %p62 = scmp.eq.s32.totalorder %s26, 1
      %p63 = por %p61, %p62
      %p65 = scmp.ne.s32.totalorder %s48, %s64
      %p66 = scmp.eq.s32.totalorder %s26, 0
      %p67 = por %p65, %p66
      %s68 = ssub.s32 %s27, %s39
      %p69 = scmp.eq.s32.totalorder %s68, 0
      %s71 = sadd.s32 %s70, 1
      %s72 = scalar_select %p69, %s70, %s71
      %p75 = pneg %p69
      %p76 = scmp.eq.s32.totalorder %s20, 1
      %p77 = por %p75, %p76
      %p78 = scmp.ne.s32.totalorder %s70, %s73
      %p79 = scmp.eq.s32.totalorder %s20, 0
      %p80 = por %p78, %p79
      %p81 = scmp.ne.s32.totalorder %s70, %s73
      %p82 = scmp.eq.s32.totalorder %s25, 1
      %p83 = por %p81, %p82
      %p84 = scmp.ne.s32.totalorder %s73, %s74
      %p85 = scmp.eq.s32.totalorder %s25, 0
      %p86 = por %p84, %p85
      %p87 = scmp.ne.s32.totalorder %s73, %s74
      %p88 = scmp.eq.s32.totalorder %s26, 1
      %p89 = por %p87, %p88
      %p91 = scmp.ne.s32.totalorder %s74, %s90
      %p92 = scmp.eq.s32.totalorder %s26, 0
      %p93 = por %p91, %p92
      %s95 = sadd.s32 %s94, 1
      %p98 = scmp.eq.s32.totalorder %s20, 1
      %p99 = scmp.ne.s32.totalorder %s94, %s96
      %p100 = scmp.eq.s32.totalorder %s20, 0
      %p101 = por %p99, %p100
      %p102 = scmp.ne.s32.totalorder %s94, %s96
      %p103 = scmp.eq.s32.totalorder %s25, 1
      %p104 = por %p102, %p103
      %p105 = scmp.ne.s32.totalorder %s96, %s97
      %p106 = scmp.eq.s32.totalorder %s25, 0
      %p107 = por %p105, %p106
      %p108 = scmp.ne.s32.totalorder %s96, %s97
      %p109 = scmp.eq.s32.totalorder %s26, 1
      %p110 = por %p108, %p109
      %p112 = scmp.ne.s32.totalorder %s97, %s111
      %p113 = scmp.eq.s32.totalorder %s26, 0
      %p114 = por %p112, %p113
      %s116 = sadd.s32 %s115, 1
      %p119 = scmp.eq.s32.totalorder %s20, 1
      %p120 = scmp.ne.s32.totalorder %s115, %s117
      %p121 = scmp.eq.s32.totalorder %s20, 0
      %p122 = por %p120, %p121
      %p123 = scmp.ne.s32.totalorder %s115, %s117
      %p124 = scmp.eq.s32.totalorder %s25, 1
      %p125 = por %p123, %p124
      %p126 = scmp.ne.s32.totalorder %s117, %s118
      %p127 = scmp.eq.s32.totalorder %s25, 0
      %p128 = por %p126, %p127
      %p129 = scmp.ne.s32.totalorder %s117, %s118
      %p130 = scmp.eq.s32.totalorder %s26, 1
      %p131 = por %p129, %p130
      %p133 = scmp.ne.s32.totalorder %s118, %s132
      %p134 = scmp.eq.s32.totalorder %s26, 0
      %p135 = por %p133, %p134
      %s137 = sadd.s32 %s136, 1
      %p140 = scmp.eq.s32.totalorder %s20, 1
      %p141 = scmp.ne.s32.totalorder %s136, %s138
      %p142 = scmp.eq.s32.totalorder %s20, 0
      %p143 = por %p141, %p142
      %p144 = scmp.ne.s32.totalorder %s136, %s138
      %p145 = scmp.eq.s32.totalorder %s25, 1
      %p146 = por %p144, %p145
      %p147 = scmp.ne.s32.totalorder %s138, %s139
      %p148 = scmp.eq.s32.totalorder %s25, 0
      %p149 = por %p147, %p148
      %p150 = scmp.ne.s32.totalorder %s138, %s139
      %p151 = scmp.eq.s32.totalorder %s26, 1
      %p152 = por %p150, %p151
      %p154 = scmp.ne.s32.totalorder %s139, %s153
      %p155 = scmp.eq.s32.totalorder %s26, 0
      %p156 = por %p154, %p155
      %s157 = ssub.s32 %s27, %s39
      %s158 = ssub.s32 %s28, %s35
      %s159 = sor.u32 %s157, %s158
      %p160 = scmp.eq.s32.totalorder %s159, 0
      %s162 = sadd.s32 %s161, 1
      %s163 = scalar_select %p160, %s161, %s162
      %p166 = pneg %p160
      %p167 = scmp.eq.s32.totalorder %s20, 1
      %p168 = por %p166, %p167
      %p169 = scmp.ne.s32.totalorder %s161, %s164
      %p170 = scmp.eq.s32.totalorder %s20, 0
      %p171 = por %p169, %p170
      %p172 = scmp.ne.s32.totalorder %s161, %s164
      %p173 = scmp.eq.s32.totalorder %s25, 1
      %p174 = por %p172, %p173
      %p175 = scmp.ne.s32.totalorder %s164, %s165
      %p176 = scmp.eq.s32.totalorder %s25, 0
      %p177 = por %p175, %p176
      %p178 = scmp.ne.s32.totalorder %s164, %s165
      %p179 = scmp.eq.s32.totalorder %s26, 1
      %p180 = por %p178, %p179
      %p182 = scmp.ne.s32.totalorder %s165, %s181
      %p183 = scmp.eq.s32.totalorder %s26, 0
      %p184 = por %p182, %p183
      %s185 = ssub.s32 %s27, %s39
      %p186 = scmp.eq.s32.totalorder %s185, 0
      %s188 = sadd.s32 %s187, 1
      %s189 = scalar_select %p186, %s187, %s188
      %p192 = pneg %p186
      %p193 = scmp.eq.s32.totalorder %s20, 1
      %p194 = por %p192, %p193
      %p195 = scmp.ne.s32.totalorder %s187, %s190
      %p196 = scmp.eq.s32.totalorder %s20, 0
      %p197 = por %p195, %p196
      %p198 = scmp.ne.s32.totalorder %s187, %s190
      %p199 = scmp.eq.s32.totalorder %s25, 1
      %p200 = por %p198, %p199
      %p201 = scmp.ne.s32.totalorder %s190, %s191
      %p202 = scmp.eq.s32.totalorder %s25, 0
      %p203 = por %p201, %p202
      %p204 = scmp.ne.s32.totalorder %s190, %s191
      %p205 = scmp.eq.s32.totalorder %s26, 1
      %p206 = por %p204, %p205
      %p208 = scmp.ne.s32.totalorder %s191, %s207
      %p209 = scmp.eq.s32.totalorder %s26, 0
      %p210 = por %p208, %p209
      %p211 = scmp.le.s32.totalorder 1, %s20
      %p212 = scmp.lt.s32.totalorder %s20, 3
      %p213 = pnand %p211, %p212
      %p214 = pneg %p213
      // Predicated region
      $region9: #{tpu_custom_call.1} parent=5 // pred_check
        _
      $region10: #{tpu_custom_call.1} parent=5 // pred_check_branch
        %216 = sbr.rel (%p213) target = $region12
      $region11: #{tpu_custom_call.1} parent=5 // pred_region
        %s217 = ssub.s32 %s20, 1
        // Predicated region
        $region13: #{tpu_custom_call.1} parent=11 // pred_check
          %p218 = pneg %p107
        $region14: #{tpu_custom_call.1} parent=11 // pred_check_branch
          %220 = sbr.rel (%p218) target = $region16
        $region15: #{tpu_custom_call.1} parent=11 // pred_region
          %222 = vsyncadd [#allocation6], 0
          %s223 = sshll.u32 %s2, 4
          %s224 = int_to_ptr.hbm [resolvable:$true] %s223
          %s225 = sshll.u32 [#allocation7], 4
          %s226 = int_to_ptr.vmem [resolvable:$true] %s225
          %231 = dma.hbm_to_vmem [thread:$0]  %s224, 256, %s226, [#allocation6], 64, 64, 4
        $region16: #{tpu_custom_call.1} parent=11 // pred_fallthru
          _
        // Predicated region
        $region17: #{tpu_custom_call.1} parent=11 // pred_check
          %p232 = pneg %p128
        $region18: #{tpu_custom_call.1} parent=11 // pred_check_branch
          %234 = sbr.rel (%p232) target = $region20
        $region19: #{tpu_custom_call.1} parent=11 // pred_region
          _
        $region20: #{tpu_custom_call.1} parent=11 // pred_fallthru
          _
        // Predicated region
        $region21: #{tpu_custom_call.1} parent=11 // pred_check
          %p235 = pneg %p149
        $region22: #{tpu_custom_call.1} parent=11 // pred_check_branch
          %237 = sbr.rel (%p235) target = $region24
        $region23: #{tpu_custom_call.1} parent=11 // pred_region
          _
        $region24: #{tpu_custom_call.1} parent=11 // pred_fallthru
          _
      $region12: #{tpu_custom_call.1} parent=5 // pred_fallthru
        _
      %p238 = scmp.lt.s32.totalorder %s20, 2
      // Predicated region
      $region25: #{tpu_custom_call.1} parent=5 // pred_check
        %p239 = pneg %p238
      $region26: #{tpu_custom_call.1} parent=5 // pred_check_branch
        %241 = sbr.rel (%p239) target = $region28
      $region27: #{tpu_custom_call.1} parent=5 // pred_region
        // Predicated region
        $region29: #{tpu_custom_call.1} parent=27 // pred_check
          %p242 = pneg %p54
        $region30: #{tpu_custom_call.1} parent=27 // pred_check_branch
          %244 = sbr.rel (%p242) target = $region32
        $region31: #{tpu_custom_call.1} parent=27 // pred_region
          %s245 = sand.u32 %s44, 1
          %s246 = scalar_lea.sflag [#allocation4], %s245
          %s247 = sand.u32 %s44, 1
          %s248 = smul.addr %s247, 32
          %s249 = scalar_lea.vmem [#allocation3], %s248
          %s250 = smul.u32 8, %s27
          %252 = vsyncadd %s246, 0
          %s253 = sadd.s32 %s28, %s250
          %s254 = smul.addr %s253, 4
          %s255 = scalar_lea.hbm %s0, %s254
          %s256 = sshll.u32 %s255, 4
          %s257 = int_to_ptr.hbm [resolvable:$true] %s256
          %s258 = sshll.u32 %s249, 4
          %s259 = int_to_ptr.vmem [resolvable:$true] %s258
          %264 = dma.hbm_to_vmem [thread:$0]  %s257, 512, %s259, %s246, 64, 64, 4
        $region32: #{tpu_custom_call.1} parent=27 // pred_fallthru
          _
        // Predicated region
        $region33: #{tpu_custom_call.1} parent=27 // pred_check
          %p265 = pneg %p80
        $region34: #{tpu_custom_call.1} parent=27 // pred_check_branch
          %267 = sbr.rel (%p265) target = $region36
        $region35: #{tpu_custom_call.1} parent=27 // pred_region
          %s268 = sand.u32 %s20, 1
          %s269 = scalar_lea.sflag [#allocation6], %s268
          %s270 = sand.u32 %s70, 1
          %s271 = smul.addr %s270, 8
          %s272 = scalar_lea.vmem [#allocation5], %s271
          %274 = vsyncadd %s269, 0
          %s275 = smul.addr %s27, 8
          %s276 = scalar_lea.hbm %s1, %s275
          %s278 = sshll.u32 %s276, 4
          %s279 = int_to_ptr.hbm [resolvable:$true] %s278
          %s280 = sshll.u32 %s272, 4
          %s281 = int_to_ptr.vmem [resolvable:$true] %s280
          %283 = dma.hbm_to_vmem [thread:$0]  %s279, 128, %s281, %s269
        $region36: #{tpu_custom_call.1} parent=27 // pred_fallthru
          _
      $region28: #{tpu_custom_call.1} parent=5 // pred_fallthru
        _
      %p284 = scmp.le.s32.totalorder 1, %s20
      %p285 = scmp.lt.s32.totalorder %s20, 3
      %p286 = pnand %p284, %p285
      %p287 = pneg %p286
      // Predicated region
      $region37: #{tpu_custom_call.1} parent=5 // pred_check
        _
      $region38: #{tpu_custom_call.1} parent=5 // pred_check_branch
        %289 = sbr.rel (%p286) target = $region40
      $region39: #{tpu_custom_call.1} parent=5 // pred_region
        %s290 = ssub.s32 %s20, 1
        %s291 = sand.u32 %s47, 1
        %s292 = scalar_lea.sflag [#allocation4], %s291
        %s293 = sand.u32 %s47, 1
        %s294 = smul.addr %s293, 32
        %s295 = scalar_lea.vmem [#allocation3], %s294
        // Predicated region
        $region41: #{tpu_custom_call.1} parent=39 // pred_check
          %p296 = pneg %p60
        $region42: #{tpu_custom_call.1} parent=39 // pred_check_branch
          %298 = sbr.rel (%p296) target = $region44
        $region43: #{tpu_custom_call.1} parent=39 // pred_region
          %300 = dma.done %s292, 512
        $region44: #{tpu_custom_call.1} parent=39 // pred_fallthru
          _
        %s301 = sand.u32 %s25, 1
        %s302 = scalar_lea.sflag [#allocation6], %s301
        %s303 = sand.u32 %s73, 1
        %s304 = smul.addr %s303, 8
        %s305 = scalar_lea.vmem [#allocation5], %s304
        // Predicated region
        $region45: #{tpu_custom_call.1} parent=39 // pred_check
          %p306 = pneg %p86
        $region46: #{tpu_custom_call.1} parent=39 // pred_check_branch
          %308 = sbr.rel (%p306) target = $region48
        $region47: #{tpu_custom_call.1} parent=39 // pred_region
          %310 = dma.done %s302, 128
        $region48: #{tpu_custom_call.1} parent=39 // pred_fallthru
          _
        // Predicated region
        $region49: #{tpu_custom_call.1} parent=39 // pred_check
          %p311 = pneg %p107
        $region50: #{tpu_custom_call.1} parent=39 // pred_check_branch
          %313 = sbr.rel (%p311) target = $region52
        $region51: #{tpu_custom_call.1} parent=39 // pred_region
          %315 = dma.done [#allocation6], 256
        $region52: #{tpu_custom_call.1} parent=39 // pred_fallthru
          _
        %s316 = sand.u32 %s47, 1
        %s317 = scalar_lea.sflag [#allocation4], %s316
        %s318 = sand.u32 %s47, 1
        %s319 = smul.addr %s318, 32
        %s320 = scalar_lea.vmem [#allocation3], %s319
        %p321 = pneg %p60
        %p322 = pneg %p57
        %s323 = sand.u32 %s25, 1
        %s324 = scalar_lea.sflag [#allocation6], %s323
        %s325 = sand.u32 %s73, 1
        %s326 = smul.addr %s325, 8
        %s327 = scalar_lea.vmem [#allocation5], %s326
        %p328 = pneg %p86
        %p329 = pneg %p83
        %p330 = pneg %p107
        %p331 = pneg %p104
        %p332 = pneg %p128
        %p333 = pneg %p125
        %p334 = pneg %p149
        %p335 = pneg %p146
        %p336 = pneg %p177
        %p337 = pneg %p174
        %p338 = scmp.lt.s32.totalorder %s29, 1
        %s339 = scalar_select %p338, %s29, 1
        %p340 = scmp.lt.s32.totalorder %s30, 0
        %s341 = scalar_select %p340, %s30, 0
        %s342 = sadd.s32 %s341, %s339
        %s343 = smul.addr %s342, 8
        %s344 = scalar_lea.vmem %s5, %s343
        %p345 = pneg %p203
        %p346 = pneg %p200
        %p347 = scmp.lt.s32.totalorder %s29, 1
        %s348 = scalar_select %p347, %s29, 1
        %s349 = smul.addr %s348, 8
        %s350 = scalar_lea.vmem %s6, %s349
        %s351 = smul.u32 8, %s29
        %p352 = scmp.lt.s32.totalorder %s29, 1
        %s353 = scalar_select %p352, %s29, 1
        %p354 = scmp.lt.s32.totalorder %s30, 0
        %s355 = scalar_select %p354, %s30, 0
        %s356 = sadd.s32 %s355, %s353
        %s357 = smul.addr %s356, 8
        %s358 = scalar_lea.vmem %s5, %s357
        %p359 = scmp.lt.s32.totalorder %s29, 1
        %s360 = scalar_select %p359, %s29, 1
        %s361 = smul.addr %s360, 8
        %s362 = scalar_lea.vmem %s6, %s361
        %p364 = scmp.eq.s32.totalorder %s30, 0
        // Predicated region
        $region53: #{tpu_custom_call.1} parent=39 // pred_check
          %p365 = pneg %p364
        $region54: #{tpu_custom_call.1} parent=39 // pred_check_branch
          %367 = sbr.rel (%p365) target = $region56
        $region55: #{tpu_custom_call.1} parent=39 // pred_region
          %vm368 = vcmask 7168
          %369 = vst.msk [vmem:[%s362] sm:$0xff] %vm368, 0.0
        $region56: #{tpu_custom_call.1} parent=39 // pred_fallthru
          _
        %v370 = vld [vmem:[%s295] sm:$0xf]
        %v371 = vld [vmem:[%s295 + $0x4] sm:$0xf]
        %v372 = vld [vmem:[%s295 + $0x8] sm:$0xf]
        %v373 = vld [vmem:[%s295 + $0xc] sm:$0xf]
        %v374 = vld [vmem:[%s295 + $0x10] sm:$0xf]
        %v375 = vld [vmem:[%s295 + $0x14] sm:$0xf]
        %v376 = vld [vmem:[%s295 + $0x18] sm:$0xf]
        %v377 = vld [vmem:[%s295 + $0x1c] sm:$0xf]
        %v378 = vld [vmem:[#allocation7] sm:$0xf]
        %v379 = vld [vmem:[#allocation7 + $0x4] sm:$0xf]
        %v380 = vld [vmem:[#allocation7 + $0x8] sm:$0xf]
        %v381 = vld [vmem:[#allocation7 + $0xc] sm:$0xf]
        %v390 = vunpack.c.l.b16 %v370
        %v391 = vunpack.c.l.b16 %v371
        %v392 = vunpack.c.l.b16 %v372
        %v393 = vunpack.c.l.b16 %v373
        %v394 = vunpack.c.l.b16 %v374
        %v395 = vunpack.c.l.b16 %v375
        %v396 = vunpack.c.l.b16 %v376
        %v397 = vunpack.c.l.b16 %v377
        %v398 = vpack.c.b16 %v391, %v390
        %v399 = vpack.c.b16 %v393, %v392
        %v400 = vpack.c.b16 %v395, %v394
        %v401 = vpack.c.b16 %v397, %v396
        %v406 = vunpack.c.l.b16 %v378
        %v407 = vunpack.c.l.b16 %v379
        %v408 = vunpack.c.l.b16 %v380
        %v409 = vunpack.c.l.b16 %v381
        %v410 = vpack.c.b16 %v407, %v406
        %v411 = vpack.c.b16 %v409, %v408
        %vm414 = vcmask 261120
        %v416 = vsel %vm414, %v398, 0
        %v419 = vsel %vm414, %v399, 0
        %v422 = vsel %vm414, %v400, 0
        %v425 = vsel %vm414, %v401, 0
        %427 = vmatpush.bf16.msra.mxu0 0
        %428 = vmatpush.bf16.msra.mxu0 0
        %429 = vmatpush.bf16.msra.mxu0 0
        %430 = vmatpush.bf16.msra.mxu0 0
        %431 = vmatpush.bf16.msra.mxu0 0
        %432 = vmatpush.bf16.msra.mxu0 0
        %433 = vmatpush.bf16.msra.mxu0 %v411
        %434 = vmatpush.bf16.msra.mxu0 %v410
        %435 = vmatmul.bf16.gmra.mxu0 %v416
        %v436 = vpop.f32.mrf.mxu0
        %v437 = vadd.f32 0.0, %v436
        %v438 = vpop.f32.mrf.mxu0
        %v439 = vadd.f32 0.0, %v438
        %440 = vmatmul.bf16.gmra.mxu0 %v419
        %v441 = vpop.f32.mrf.mxu0
        %v442 = vadd.f32 0.0, %v441
        %v443 = vpop.f32.mrf.mxu0
        %v444 = vadd.f32 0.0, %v443
        %445 = vmatmul.bf16.gmra.mxu0 %v422
        %v446 = vpop.f32.mrf.mxu0
        %v447 = vadd.f32 0.0, %v446
        %v448 = vpop.f32.mrf.mxu0
        %v449 = vadd.f32 0.0, %v448
        %450 = vmatmul.bf16.gmra.mxu0 %v425
        %v451 = vpop.f32.mrf.mxu0
        %v452 = vadd.f32 0.0, %v451
        %v453 = vpop.f32.mrf.mxu0
        %v454 = vadd.f32 0.0, %v453
        %455 = vdwg.mxu0
        %v456 = vld [vmem:[%s305] sm:$0xff]
        %v458 = vrot.slane %v456, 1
        %v459 = vrot.slane %v456, 2
        %v460 = vrot.slane %v456, 3
        %v461 = vrot.slane %v456, 4
        %v462 = vrot.slane %v456, 5
        %v463 = vrot.slane %v456, 6
        %v464 = vrot.slane %v456, 7
        %v465 = vperm.slane %v456, 0
        %v466 = vperm.slane %v458, 0
        %v467 = vperm.slane %v459, 0
        %v468 = vperm.slane %v460, 0
        %v469 = vperm.slane %v461, 0
        %v470 = vperm.slane %v462, 0
        %v471 = vperm.slane %v463, 0
        %v472 = vperm.slane %v464, 0
        %v481 = vadd.f32 %v437, %v465
        %v482 = vadd.f32 %v439, %v466
        %v483 = vadd.f32 %v442, %v467
        %v484 = vadd.f32 %v444, %v468
        %v485 = vadd.f32 %v447, %v469
        %v486 = vadd.f32 %v449, %v470
        %v487 = vadd.f32 %v452, %v471
        %v488 = vadd.f32 %v454, %v472
        %v489 = vtanh.pop %v481
        %v490 = vtanh.pop %v482
        %v491 = vtanh.pop %v483
        %v492 = vtanh.pop %v484
        %v493 = vtanh.pop %v485
        %v494 = vtanh.pop %v486
        %v495 = vtanh.pop %v487
        %v496 = vtanh.pop %v488
        %v497 = vld [vmem:[%s3] sm:$0x1]
        %v499 = vperm.slane %v497, 0
        %v501 = vmul.f32 %v489, %v499
        %v502 = vmul.f32 %v490, %v499
        %v503 = vmul.f32 %v491, %v499
        %v504 = vmul.f32 %v492, %v499
        %v505 = vmul.f32 %v493, %v499
        %v506 = vmul.f32 %v494, %v499
        %v507 = vmul.f32 %v495, %v499
        %v508 = vmul.f32 %v496, %v499
        %v509 = vsel %vm414, %v501, 0.0
        %510 = vadd.xlane.f32.xlu0 %v509
        %v511 = vpop.xlane.xlu0 %510
        %v512 = vsel %vm414, %v502, 0.0
        %513 = vadd.xlane.f32.xlu0 %v512
        %v514 = vpop.xlane.xlu0 %513
        %v515 = vsel %vm414, %v503, 0.0
        %516 = vadd.xlane.f32.xlu0 %v515
        %v517 = vpop.xlane.xlu0 %516
        %v518 = vsel %vm414, %v504, 0.0
        %519 = vadd.xlane.f32.xlu0 %v518
        %v520 = vpop.xlane.xlu0 %519
        %v521 = vsel %vm414, %v505, 0.0
        %522 = vadd.xlane.f32.xlu0 %v521
        %v523 = vpop.xlane.xlu0 %522
        %v524 = vsel %vm414, %v506, 0.0
        %525 = vadd.xlane.f32.xlu0 %v524
        %v526 = vpop.xlane.xlu0 %525
        %v527 = vsel %vm414, %v507, 0.0
        %528 = vadd.xlane.f32.xlu0 %v527
        %v529 = vpop.xlane.xlu0 %528
        %v530 = vsel %vm414, %v508, 0.0
        %531 = vadd.xlane.f32.xlu0 %v530
        %v532 = vpop.xlane.xlu0 %531
        %s533 = sld [smem:[#allocation2]]
        %v534 = vstv %s533
        %v535 = vadd.f32 %v511, %v534
        %v536 = vadd.f32 %v514, %v534
        %v537 = vadd.f32 %v517, %v534
        %v538 = vadd.f32 %v520, %v534
        %v539 = vadd.f32 %v523, %v534
        %v540 = vadd.f32 %v526, %v534
        %v541 = vadd.f32 %v529, %v534
        %v542 = vadd.f32 %v532, %v534
        %s543 = smul.u32 %s30, 8
        %v544 = vlaneseq
        %v545 = vand.u32 %v544, 127
        %v546 = vstv %s543
        %v547 = vadd.s32 %v546, %v545
        %vm548 = vcmp.lt.s32.totalorder %v547, 8
        %v549 = vmul.f32 %v535, 0.1
        %v550 = vmul.f32 %v536, 0.1
        %v551 = vmul.f32 %v537, 0.1
        %v552 = vmul.f32 %v538, 0.1
        %v553 = vmul.f32 %v539, 0.1
        %v554 = vmul.f32 %v540, 0.1
        %v555 = vmul.f32 %v541, 0.1
        %v556 = vmul.f32 %v542, 0.1
        %v557 = vmul.f32 %v549, 1.442695
        %v558 = vpow.pop %v557
        %v559 = vmul.f32 %v550, 1.442695
        %v560 = vpow.pop %v559
        %v561 = vmul.f32 %v551, 1.442695
        %v562 = vpow.pop %v561
        %v563 = vmul.f32 %v552, 1.442695
        %v564 = vpow.pop %v563
        %v565 = vmul.f32 %v553, 1.442695
        %v566 = vpow.pop %v565
        %v567 = vmul.f32 %v554, 1.442695
        %v568 = vpow.pop %v567
        %v569 = vmul.f32 %v555, 1.442695
        %v570 = vpow.pop %v569
        %v571 = vmul.f32 %v556, 1.442695
        %v572 = vpow.pop %v571
        %v573 = vsel %vm548, 1, 0
        %vm574 = vcmp.eq.s32.totalorder %v573, 1
        %v583 = vperm.slane %v558, %v545
        %v584 = vperm.slane %v560, %v545
        %v585 = vperm.slane %v562, %v545
        %v586 = vperm.slane %v564, %v545
        %v587 = vperm.slane %v566, %v545
        %v588 = vperm.slane %v568, %v545
        %v589 = vperm.slane %v570, %v545
        %v590 = vperm.slane %v572, %v545
        %vm591 = vcmask 1041409
        %v592 = vsel %vm591, %v584, %v583
        %vm593 = vcmask 1042434
        %v594 = vsel %vm593, %v585, %v592
        %vm595 = vcmask 1043459
        %v596 = vsel %vm595, %v586, %v594
        %vm597 = vcmask 1044484
        %v598 = vsel %vm597, %v587, %v596
        %vm599 = vcmask 1045509
        %v600 = vsel %vm599, %v588, %v598
        %vm601 = vcmask 1046534
        %v602 = vsel %vm601, %v589, %v600
        %vm603 = vcmask 1047559
        %v604 = vsel %vm603, %v590, %v602
        %v606 = vsel %vm574, %v604, 0.0
        %vm607 = vcmask 64512
        %608 = vst.msk [vmem:[%s358] sm:$0xff] %vm607, %v606
        %v609 = vld [vmem:[%s362] sm:$0xff]
        %v610 = vsel %vm607, %v606, 0.0
        %611 = vadd.xlane.f32.xlu0 %v610
        %v612 = vpop.xlane.xlu0 %611
        %v613 = vadd.f32 %v609, %v612
        %vm614 = vcmask 7168
        %615 = vst.msk [vmem:[%s362] sm:$0xff] %vm614, %v613
        %p616 = scmp.lt.s32.totalorder %s29, 1
        %s617 = scalar_select %p616, %s29, 1
        %p618 = scmp.lt.s32.totalorder %s30, 0
        %s619 = scalar_select %p618, %s30, 0
        %s620 = sadd.s32 %s619, %s617
        %s621 = smul.addr %s620, 8
        %s622 = scalar_lea.vmem %s5, %s621
        %p623 = scmp.lt.s32.totalorder %s29, 1
        %s624 = scalar_select %p623, %s29, 1
        %s625 = smul.addr %s624, 8
        %s626 = scalar_lea.vmem %s6, %s625
        // Predicated region
        $region57: #{tpu_custom_call.1} parent=39 // pred_check
          %p627 = pneg %p174
        $region58: #{tpu_custom_call.1} parent=39 // pred_check_branch
          %629 = sbr.rel (%p627) target = $region60
        $region59: #{tpu_custom_call.1} parent=39 // pred_region
          _
        $region60: #{tpu_custom_call.1} parent=39 // pred_fallthru
          _
        // Predicated region
        $region61: #{tpu_custom_call.1} parent=39 // pred_check
          %p630 = pneg %p200
        $region62: #{tpu_custom_call.1} parent=39 // pred_check_branch
          %632 = sbr.rel (%p630) target = $region64
        $region63: #{tpu_custom_call.1} parent=39 // pred_region
          _
        $region64: #{tpu_custom_call.1} parent=39 // pred_fallthru
          _
      $region40: #{tpu_custom_call.1} parent=5 // pred_fallthru
        _
      %p633 = scmp.le.s32.totalorder 2, %s20
      // Predicated region
      $region65: #{tpu_custom_call.1} parent=5 // pred_check
        %p634 = pneg %p633
      $region66: #{tpu_custom_call.1} parent=5 // pred_check_branch
        %636 = sbr.rel (%p634) target = $region68
      $region67: #{tpu_custom_call.1} parent=5 // pred_region
        %s637 = ssub.s32 %s20, 2
        // Predicated region
        $region69: #{tpu_custom_call.1} parent=67 // pred_check
          %p638 = pneg %p180
        $region70: #{tpu_custom_call.1} parent=67 // pred_check_branch
          %640 = sbr.rel (%p638) target = $region72
        $region71: #{tpu_custom_call.1} parent=67 // pred_region
          %p641 = scmp.lt.s32.totalorder %s31, 1
          %s642 = scalar_select %p641, %s31, 1
          %p643 = scmp.lt.s32.totalorder %s32, 0
          %s644 = scalar_select %p643, %s32, 0
          %s645 = sadd.s32 %s644, %s642
          %s646 = smul.addr %s645, 8
          %s647 = scalar_lea.vmem %s5, %s646
        $region72: #{tpu_custom_call.1} parent=67 // pred_fallthru
          _
        // Predicated region
        $region73: #{tpu_custom_call.1} parent=67 // pred_check
          %p648 = pneg %p206
        $region74: #{tpu_custom_call.1} parent=67 // pred_check_branch
          %650 = sbr.rel (%p648) target = $region76
        $region75: #{tpu_custom_call.1} parent=67 // pred_region
          %p651 = scmp.lt.s32.totalorder %s31, 1
          %s652 = scalar_select %p651, %s31, 1
          %s653 = smul.addr %s652, 8
          %s654 = scalar_lea.vmem %s6, %s653
        $region76: #{tpu_custom_call.1} parent=67 // pred_fallthru
          _
      $region68: #{tpu_custom_call.1} parent=5 // pred_fallthru
        _
    $region6: #{tpu_custom_call.1} parent=1 // loop_footer
      %s24 = sadd.s32 1, %s20
    $region7: #{tpu_custom_call.1} parent=1 // loop_footer_branch
      %19 = sbr.rel target = $region3
    $region8: #{tpu_custom_call.1} parent=1 // loop_exit
      _
    %655 = vsyncpa [#allocation4], 1
    %s656 = scalar_lea.sflag [#allocation4], 1
    %657 = vsyncpa %s656, 1
    %658 = vsyncpa [#allocation6], 1
    %s659 = scalar_lea.sflag [#allocation6], 1
    %660 = vsyncpa %s659, 1

</llo_original>
